<compile_context>
chip_gen: v7x
topology: tpu7x:2x2x1
jax: 0.10.0
libtpu: 0.0.40
codegen_flags: <defaults>
</compile_context>

<pallas_src>
import functools

import jax
import jax.numpy as jnp
import numpy as np
from jax import lax
from jax.experimental import pallas as pl
from jax.experimental.pallas import tpu as pltpu


# -----------------------------------------------------------------------------
# Fused decoder kernel (one grid step == one batch element)
#   x_ref : (1, Cin, H*W)          input, channels-major
#   w1    : (mid, Cin)             conv1 weight with BN1 scale folded in
#   b1    : (mid, 1)               BN1 bias
#   wt    : (K*K, mid, mid)        per-tap ConvTranspose matrices (BN2 folded)
#   g     : (K*K, H*W, Ho*Wo)      precomputed 0/1 routing (stride-2 scatter)
#   b2    : (mid, 1)               BN2 bias
#   w2    : (Cout, mid)            conv2 weight with BN3 scale folded in
#   b3    : (Cout, 1)              BN3 bias
#   o_ref : (1, Cout, Ho*Wo)       output, channels-major (lane-dense)
# -----------------------------------------------------------------------------
def _decoder_fused_kernel(x_ref, w1_ref, b1_ref, wt_ref, g_ref, b2_ref,
                          w2_ref, b3_ref, o_ref, *, K):
    f32 = jnp.float32

    # ---- conv1 (1x1) + folded BN + ReLU:  (mid, Cin) @ (Cin, HW) ----
    y1 = jnp.dot(w1_ref[...], x_ref[0], preferred_element_type=f32)
    y1 = jnp.maximum(y1 + b1_ref[...], 0.0)

    # ---- ConvTranspose2d + folded BN + ReLU ----
    # Per tap t = (kh, kw): project channels (W_t @ y1), then scatter input
    # pixels to output pixels with the precomputed 0/1 routing matrix G_t.
    # Both steps are MXU matmuls; no mask building / int work in-kernel.
    mid = wt_ref.shape[1]
    n_out = g_ref.shape[-1]
    acc = jnp.zeros((mid, n_out), f32)
    for t in range(K * K):                     # statically unrolled; taps + routing
        z = jnp.dot(wt_ref[t], y1, preferred_element_type=f32)          # (mid, HW)
        acc = acc + jnp.dot(z, g_ref[t], preferred_element_type=f32)    # (mid, HoWo)
    y2 = jnp.maximum(acc + b2_ref[...], 0.0)

    # ---- conv2 (1x1) + folded BN + ReLU:  (Cout, mid) @ (mid, Ho*Wo) ----
    y3 = jnp.dot(w2_ref[...], y2, preferred_element_type=f32)
    o_ref[0] = jnp.maximum(y3 + b3_ref[...], 0.0).astype(o_ref.dtype)


# -----------------------------------------------------------------------------
# Host-side helpers: BN fold + routing-matrix construction
# -----------------------------------------------------------------------------
def fold_bn(stats, eps=1e-5):
    gamma, beta, mean, var = stats
    scale = gamma / jnp.sqrt(var + eps)
    bias = beta - mean * scale
    return scale, bias


def _build_routing(H, W, Ho, Wo, K, stride, padding):
    """0/1 routing matrices: G[t, p_in, p_out] = 1 iff under tap t the
    transposed conv maps input pixel p_in to output pixel p_out."""
    hw = np.arange(H * W)
    sh = (stride * (hw // W))[:, None]          # (HW, 1)
    sw = (stride * (hw % W))[:, None]
    howo = np.arange(Ho * Wo)
    ho = (howo // Wo)[None, :]                  # (1, HoWo)
    wo = (howo % Wo)[None, :]
    g = np.zeros((K * K, H * W, Ho * Wo), np.float32)
    for kh in range(K):
        for kw in range(K):
            hit = ((ho - sh) == (kh - padding)) & ((wo - sw) == (kw - padding))
            g[kh * K + kw] = hit.astype(np.float32)
    return g


# -----------------------------------------------------------------------------
# Wrapper: BN fold, weight layout, routing constants, pallas_call
# -----------------------------------------------------------------------------
def decoder_forward(x_nchw, params, *, stride, padding, output_padding, eps=1e-5):
    N, Cin, H, W = x_nchw.shape
    w1 = params["w1"][:, :, 0, 0]            # (mid, Cin)        Conv2d OIHW
    wt = params["wt"]                        # (mid, mid, K, K)  ConvTranspose2d IOHW
    w2 = params["w2"][:, :, 0, 0]            # (Cout, mid)
    mid, Cout, K = w1.shape[0], w2.shape[0], wt.shape[-1]
    s, p, op = stride, padding, output_padding
    Ho = (H - 1) * s - 2 * p + K + op
    Wo = (W - 1) * s - 2 * p + K + op

    s1, b1 = fold_bn(params["bn1"], eps)
    s2, b2 = fold_bn(params["bn2"], eps)
    s3, b3 = fold_bn(params["bn3"], eps)

    # Fold BN scale into the (out, in) weight matrices; keep bias as (C, 1).
    w1f = w1 * s1[:, None]
    # Per-tap matrices: wtf[kh*K+kw][o, i] = Wt[i, o, kh, kw]  (no kernel flip)
    wtf = jnp.transpose(wt, (2, 3, 1, 0)).reshape(K * K, mid, mid) * s2[None, :, None]
    w2f = w2 * s3[:, None]

    # Trace-time constant routing matrices (shared across the whole batch).
    g = jnp.asarray(_build_routing(H, W, Ho, Wo, K, s, p))

    x_cm = x_nchw.reshape(N, Cin, H * W)     # NCHW -> channels-major (no transpose)

    out = pl.pallas_call(
        functools.partial(_decoder_fused_kernel, K=K),
        out_shape=jax.ShapeDtypeStruct((N, Cout, Ho * Wo), x_nchw.dtype),
        grid_spec=pltpu.PrefetchScalarGridSpec(
            num_scalar_prefetch=0,
            grid=(N,),
            in_specs=[
                pl.BlockSpec((1, Cin, H * W), lambda n: (n, 0, 0)),         # x (per batch)
                pl.BlockSpec((mid, Cin), lambda n: (0, 0)),                 # w1 (resident)
                pl.BlockSpec((mid, 1), lambda n: (0, 0)),                   # b1
                pl.BlockSpec((K * K, mid, mid), lambda n: (0, 0, 0)),       # wt taps
                pl.BlockSpec((K * K, H * W, Ho * Wo), lambda n: (0, 0, 0)), # routing
                pl.BlockSpec((mid, 1), lambda n: (0, 0)),                   # b2
                pl.BlockSpec((Cout, mid), lambda n: (0, 0)),                # w2
                pl.BlockSpec((Cout, 1), lambda n: (0, 0)),                  # b3
            ],
            out_specs=pl.BlockSpec((1, Cout, Ho * Wo), lambda n: (n, 0, 0)),
        ),
        compiler_params=pltpu.CompilerParams(
            dimension_semantics=("parallel",)),   # batch shards across TensorCores
    )(x_cm, w1f, b1.reshape(mid, 1), wtf, g, b2.reshape(mid, 1),
      w2f, b3.reshape(Cout, 1))

    return out.reshape(N, Cout, Ho, Wo)       # already NCHW: no final transpose


# -----------------------------------------------------------------------------
# Deterministic parameter init (PyTorch layouts)
# -----------------------------------------------------------------------------
def init_params(key, in_planes, out_planes, kernel_size):
    mid = in_planes // 4
    ks = jax.random.split(key, 6)
    w1 = 0.1 * jax.random.normal(ks[0], (mid, in_planes, 1, 1), jnp.float32)
    wt = 0.1 * jax.random.normal(ks[1], (mid, mid, kernel_size, kernel_size),
                                 jnp.float32)
    w2 = 0.1 * jax.random.normal(ks[2], (out_planes, mid, 1, 1), jnp.float32)

    def bn(k, c):
        k1, k2, k3, k4 = jax.random.split(k, 4)
        gamma = 1.0 + 0.1 * jax.random.normal(k1, (c,), jnp.float32)
        beta = 0.1 * jax.random.normal(k2, (c,), jnp.float32)
        mean = 0.1 * jax.random.normal(k3, (c,), jnp.float32)
        var = 1.0 + 0.1 * jax.random.uniform(k4, (c,), jnp.float32)
        return gamma, beta, mean, var

    return dict(w1=w1, wt=wt, w2=w2,
                bn1=bn(ks[3], mid), bn2=bn(ks[4], mid), bn3=bn(ks[5], out_planes))


# -----------------------------------------------------------------------------
# Pure-JAX reference (f32-accurate XLA convolutions, NCHW/OIHW)
# -----------------------------------------------------------------------------
def ref_decoder(x, params, *, stride, padding, output_padding, eps=1e-5):
    def bn_relu(y, stats):
        g, b, m, v = stats
        y = (y - m[None, :, None, None]) / jnp.sqrt(v + eps)[None, :, None, None]
        y = y * g[None, :, None, None] + b[None, :, None, None]
        return jnp.maximum(y, 0.0)

    dn = ("NCHW", "OIHW", "NCHW")
    hi_p = lax.Precision.HIGHEST  # ground truth stays f32-accurate
    y = lax.conv_general_dilated(x, params["w1"], (1, 1), "VALID",
                                 dimension_numbers=dn, precision=hi_p)
    y = bn_relu(y, params["bn1"])
    K = params["wt"].shape[-1]
    wt_conv = jnp.transpose(jnp.flip(params["wt"], (2, 3)), (1, 0, 2, 3))
    lo = K - 1 - padding
    hi = K - 1 - padding + output_padding
    y = lax.conv_general_dilated(y, wt_conv, (1, 1), padding=[(lo, hi), (lo, hi)],
                                 lhs_dilation=(stride, stride),
                                 dimension_numbers=dn, precision=hi_p)
    y = bn_relu(y, params["bn2"])
    y = lax.conv_general_dilated(y, params["w2"], (1, 1), "VALID",
                                 dimension_numbers=dn, precision=hi_p)
    y = bn_relu(y, params["bn3"])
    return y


if __name__ == "__main__":
    # Decoder(in_planes=16, out_planes=8, kernel_size=3, stride=2,
    #         padding=1, output_padding=1)  -- LinkNet-style upsampling decoder
    in_planes, out_planes = 16, 8
    kernel_size, stride, padding, output_padding = 3, 2, 1, 1
    N, H, W = 2, 8, 8

    key = jax.random.PRNGKey(0)
    kx, kp = jax.random.split(key)
    x = jax.random.normal(kx, (N, in_planes, H, W), jnp.float32)
    params = init_params(kp, in_planes, out_planes, kernel_size)

    fwd = jax.jit(functools.partial(decoder_forward, stride=stride,
                                    padding=padding,
                                    output_padding=output_padding))
    out = jax.block_until_ready(fwd(x, params))

    Ho = (H - 1) * stride - 2 * padding + kernel_size + output_padding
    Wo = (W - 1) * stride - 2 * padding + kernel_size + output_padding
    assert out.shape == (N, out_planes, Ho, Wo), out.shape

    ref = ref_decoder(x, params, stride=stride, padding=padding,
                      output_padding=output_padding)
    # Kernel uses default (single-pass) MXU precision; the reference is
    # f32-accurate, so tolerances are relaxed accordingly.
    np.testing.assert_allclose(np.asarray(out), np.asarray(ref),
                               rtol=2e-2, atol=1e-2)
    print("KERNEL_OK")
</pallas_src>

<mosaic_0001>
module attributes {stable_mosaic.version = 11 : i64} {
  func.func @_decoder_fused_kernel(%arg0: i32, %arg1: memref<1x16x64xf32, #tpu.memory_space<vmem>>, %arg2: memref<4x16xf32, #tpu.memory_space<vmem>>, %arg3: memref<4x1xf32, #tpu.memory_space<vmem>>, %arg4: memref<9x4x4xf32, #tpu.memory_space<vmem>>, %arg5: memref<9x64x256xf32, #tpu.memory_space<vmem>>, %arg6: memref<4x1xf32, #tpu.memory_space<vmem>>, %arg7: memref<8x4xf32, #tpu.memory_space<vmem>>, %arg8: memref<8x1xf32, #tpu.memory_space<vmem>>, %arg9: memref<1x8x256xf32, #tpu.memory_space<vmem>>) attributes {dimension_semantics = [#tpu.dimension_semantics<parallel>], iteration_bounds = array<i64: 2>, scalar_prefetch = 0 : i64, scratch_operands = 0 : i64, tpu.core_type = #tpu.core_type<tc>, window_params = [{transform_indices = @transform_0, window_bounds = array<i64: 1, 16, 64>}, {pipeline_mode = #tpu.pipeline_mode<synchronous>, transform_indices = @transform_1, window_bounds = array<i64: 4, 16>}, {pipeline_mode = #tpu.pipeline_mode<synchronous>, transform_indices = @transform_2, window_bounds = array<i64: 4, 1>}, {pipeline_mode = #tpu.pipeline_mode<synchronous>, transform_indices = @transform_3, window_bounds = array<i64: 9, 4, 4>}, {pipeline_mode = #tpu.pipeline_mode<synchronous>, transform_indices = @transform_4, window_bounds = array<i64: 9, 64, 256>}, {pipeline_mode = #tpu.pipeline_mode<synchronous>, transform_indices = @transform_5, window_bounds = array<i64: 4, 1>}, {pipeline_mode = #tpu.pipeline_mode<synchronous>, transform_indices = @transform_6, window_bounds = array<i64: 8, 4>}, {pipeline_mode = #tpu.pipeline_mode<synchronous>, transform_indices = @transform_7, window_bounds = array<i64: 8, 1>}, {transform_indices = @transform_8, window_bounds = array<i64: 1, 8, 256>}]} {
    %c0 = arith.constant 0 : index
    %c0_0 = arith.constant 0 : index
    %0 = vector.load %arg2[%c0, %c0_0] : memref<4x16xf32, #tpu.memory_space<vmem>>, vector<4x16xf32>
    %c0_1 = arith.constant 0 : index
    %c0_2 = arith.constant 0 : index
    %c0_3 = arith.constant 0 : index
    %1 = vector.load %arg1[%c0_1, %c0_2, %c0_3] : memref<1x16x64xf32, #tpu.memory_space<vmem>>, vector<1x16x64xf32>
    %2 = vector.shape_cast %1 : vector<1x16x64xf32> to vector<16x64xf32>
    %cst = arith.constant dense<0.000000e+00> : vector<4x64xf32>
    %3 = tpu.matmul %0, %2, %cst {dimension_numbers = #tpu.dot_dimension_numbers<[1], [0], [0], [1], [0, 0, 1, 1], [], []>} : vector<4x16xf32>, vector<16x64xf32>, vector<4x64xf32> -> vector<4x64xf32>
    %c0_4 = arith.constant 0 : index
    %c0_5 = arith.constant 0 : index
    %4 = vector.load %arg3[%c0_4, %c0_5] : memref<4x1xf32, #tpu.memory_space<vmem>>, vector<4x1xf32>
    %5 = vector.broadcast %4 : vector<4x1xf32> to vector<4x64xf32>
    %6 = arith.addf %3, %5 : vector<4x64xf32>
    %cst_6 = arith.constant 0.000000e+00 : f32
    %7 = vector.broadcast %cst_6 : f32 to vector<4x64xf32>
    %8 = arith.maximumf %6, %7 : vector<4x64xf32>
    %cst_7 = arith.constant 0.000000e+00 : f32
    %9 = vector.broadcast %cst_7 : f32 to vector<4x256xf32>
    %c0_8 = arith.constant 0 : index
    %c0_9 = arith.constant 0 : index
    %c0_10 = arith.constant 0 : index
    %10 = vector.load %arg4[%c0_8, %c0_9, %c0_10] : memref<9x4x4xf32, #tpu.memory_space<vmem>>, vector<1x4x4xf32>
    %11 = vector.shape_cast %10 : vector<1x4x4xf32> to vector<4x4xf32>
    %cst_11 = arith.constant dense<0.000000e+00> : vector<4x64xf32>
    %12 = tpu.matmul %11, %8, %cst_11 {dimension_numbers = #tpu.dot_dimension_numbers<[1], [0], [0], [1], [0, 0, 1, 1], [], []>} : vector<4x4xf32>, vector<4x64xf32>, vector<4x64xf32> -> vector<4x64xf32>
    %c0_12 = arith.constant 0 : index
    %c0_13 = arith.constant 0 : index
    %c0_14 = arith.constant 0 : index
    %13 = vector.load %arg5[%c0_12, %c0_13, %c0_14] : memref<9x64x256xf32, #tpu.memory_space<vmem>>, vector<1x64x256xf32>
    %14 = vector.shape_cast %13 : vector<1x64x256xf32> to vector<64x256xf32>
    %cst_15 = arith.constant dense<0.000000e+00> : vector<4x256xf32>
    %15 = tpu.matmul %12, %14, %cst_15 {dimension_numbers = #tpu.dot_dimension_numbers<[1], [0], [0], [1], [0, 0, 1, 1], [], []>} : vector<4x64xf32>, vector<64x256xf32>, vector<4x256xf32> -> vector<4x256xf32>
    %16 = arith.addf %9, %15 : vector<4x256xf32>
    %c1 = arith.constant 1 : index
    %c0_16 = arith.constant 0 : index
    %c0_17 = arith.constant 0 : index
    %17 = vector.load %arg4[%c1, %c0_16, %c0_17] : memref<9x4x4xf32, #tpu.memory_space<vmem>>, vector<1x4x4xf32>
    %18 = vector.shape_cast %17 : vector<1x4x4xf32> to vector<4x4xf32>
    %cst_18 = arith.constant dense<0.000000e+00> : vector<4x64xf32>
    %19 = tpu.matmul %18, %8, %cst_18 {dimension_numbers = #tpu.dot_dimension_numbers<[1], [0], [0], [1], [0, 0, 1, 1], [], []>} : vector<4x4xf32>, vector<4x64xf32>, vector<4x64xf32> -> vector<4x64xf32>
    %c1_19 = arith.constant 1 : index
    %c0_20 = arith.constant 0 : index
    %c0_21 = arith.constant 0 : index
    %20 = vector.load %arg5[%c1_19, %c0_20, %c0_21] : memref<9x64x256xf32, #tpu.memory_space<vmem>>, vector<1x64x256xf32>
    %21 = vector.shape_cast %20 : vector<1x64x256xf32> to vector<64x256xf32>
    %cst_22 = arith.constant dense<0.000000e+00> : vector<4x256xf32>
    %22 = tpu.matmul %19, %21, %cst_22 {dimension_numbers = #tpu.dot_dimension_numbers<[1], [0], [0], [1], [0, 0, 1, 1], [], []>} : vector<4x64xf32>, vector<64x256xf32>, vector<4x256xf32> -> vector<4x256xf32>
    %23 = arith.addf %16, %22 : vector<4x256xf32>
    %c2 = arith.constant 2 : index
    %c0_23 = arith.constant 0 : index
    %c0_24 = arith.constant 0 : index
    %24 = vector.load %arg4[%c2, %c0_23, %c0_24] : memref<9x4x4xf32, #tpu.memory_space<vmem>>, vector<1x4x4xf32>
    %25 = vector.shape_cast %24 : vector<1x4x4xf32> to vector<4x4xf32>
    %cst_25 = arith.constant dense<0.000000e+00> : vector<4x64xf32>
    %26 = tpu.matmul %25, %8, %cst_25 {dimension_numbers = #tpu.dot_dimension_numbers<[1], [0], [0], [1], [0, 0, 1, 1], [], []>} : vector<4x4xf32>, vector<4x64xf32>, vector<4x64xf32> -> vector<4x64xf32>
    %c2_26 = arith.constant 2 : index
    %c0_27 = arith.constant 0 : index
    %c0_28 = arith.constant 0 : index
    %27 = vector.load %arg5[%c2_26, %c0_27, %c0_28] : memref<9x64x256xf32, #tpu.memory_space<vmem>>, vector<1x64x256xf32>
    %28 = vector.shape_cast %27 : vector<1x64x256xf32> to vector<64x256xf32>
    %cst_29 = arith.constant dense<0.000000e+00> : vector<4x256xf32>
    %29 = tpu.matmul %26, %28, %cst_29 {dimension_numbers = #tpu.dot_dimension_numbers<[1], [0], [0], [1], [0, 0, 1, 1], [], []>} : vector<4x64xf32>, vector<64x256xf32>, vector<4x256xf32> -> vector<4x256xf32>
    %30 = arith.addf %23, %29 : vector<4x256xf32>
    %c3 = arith.constant 3 : index
    %c0_30 = arith.constant 0 : index
    %c0_31 = arith.constant 0 : index
    %31 = vector.load %arg4[%c3, %c0_30, %c0_31] : memref<9x4x4xf32, #tpu.memory_space<vmem>>, vector<1x4x4xf32>
    %32 = vector.shape_cast %31 : vector<1x4x4xf32> to vector<4x4xf32>
    %cst_32 = arith.constant dense<0.000000e+00> : vector<4x64xf32>
    %33 = tpu.matmul %32, %8, %cst_32 {dimension_numbers = #tpu.dot_dimension_numbers<[1], [0], [0], [1], [0, 0, 1, 1], [], []>} : vector<4x4xf32>, vector<4x64xf32>, vector<4x64xf32> -> vector<4x64xf32>
    %c3_33 = arith.constant 3 : index
    %c0_34 = arith.constant 0 : index
    %c0_35 = arith.constant 0 : index
    %34 = vector.load %arg5[%c3_33, %c0_34, %c0_35] : memref<9x64x256xf32, #tpu.memory_space<vmem>>, vector<1x64x256xf32>
    %35 = vector.shape_cast %34 : vector<1x64x256xf32> to vector<64x256xf32>
    %cst_36 = arith.constant dense<0.000000e+00> : vector<4x256xf32>
    %36 = tpu.matmul %33, %35, %cst_36 {dimension_numbers = #tpu.dot_dimension_numbers<[1], [0], [0], [1], [0, 0, 1, 1], [], []>} : vector<4x64xf32>, vector<64x256xf32>, vector<4x256xf32> -> vector<4x256xf32>
    %37 = arith.addf %30, %36 : vector<4x256xf32>
    %c4 = arith.constant 4 : index
    %c0_37 = arith.constant 0 : index
    %c0_38 = arith.constant 0 : index
    %38 = vector.load %arg4[%c4, %c0_37, %c0_38] : memref<9x4x4xf32, #tpu.memory_space<vmem>>, vector<1x4x4xf32>
    %39 = vector.shape_cast %38 : vector<1x4x4xf32> to vector<4x4xf32>
    %cst_39 = arith.constant dense<0.000000e+00> : vector<4x64xf32>
    %40 = tpu.matmul %39, %8, %cst_39 {dimension_numbers = #tpu.dot_dimension_numbers<[1], [0], [0], [1], [0, 0, 1, 1], [], []>} : vector<4x4xf32>, vector<4x64xf32>, vector<4x64xf32> -> vector<4x64xf32>
    %c4_40 = arith.constant 4 : index
    %c0_41 = arith.constant 0 : index
    %c0_42 = arith.constant 0 : index
    %41 = vector.load %arg5[%c4_40, %c0_41, %c0_42] : memref<9x64x256xf32, #tpu.memory_space<vmem>>, vector<1x64x256xf32>
    %42 = vector.shape_cast %41 : vector<1x64x256xf32> to vector<64x256xf32>
    %cst_43 = arith.constant dense<0.000000e+00> : vector<4x256xf32>
    %43 = tpu.matmul %40, %42, %cst_43 {dimension_numbers = #tpu.dot_dimension_numbers<[1], [0], [0], [1], [0, 0, 1, 1], [], []>} : vector<4x64xf32>, vector<64x256xf32>, vector<4x256xf32> -> vector<4x256xf32>
    %44 = arith.addf %37, %43 : vector<4x256xf32>
    %c5 = arith.constant 5 : index
    %c0_44 = arith.constant 0 : index
    %c0_45 = arith.constant 0 : index
    %45 = vector.load %arg4[%c5, %c0_44, %c0_45] : memref<9x4x4xf32, #tpu.memory_space<vmem>>, vector<1x4x4xf32>
    %46 = vector.shape_cast %45 : vector<1x4x4xf32> to vector<4x4xf32>
    %cst_46 = arith.constant dense<0.000000e+00> : vector<4x64xf32>
    %47 = tpu.matmul %46, %8, %cst_46 {dimension_numbers = #tpu.dot_dimension_numbers<[1], [0], [0], [1], [0, 0, 1, 1], [], []>} : vector<4x4xf32>, vector<4x64xf32>, vector<4x64xf32> -> vector<4x64xf32>
    %c5_47 = arith.constant 5 : index
    %c0_48 = arith.constant 0 : index
    %c0_49 = arith.constant 0 : index
    %48 = vector.load %arg5[%c5_47, %c0_48, %c0_49] : memref<9x64x256xf32, #tpu.memory_space<vmem>>, vector<1x64x256xf32>
    %49 = vector.shape_cast %48 : vector<1x64x256xf32> to vector<64x256xf32>
    %cst_50 = arith.constant dense<0.000000e+00> : vector<4x256xf32>
    %50 = tpu.matmul %47, %49, %cst_50 {dimension_numbers = #tpu.dot_dimension_numbers<[1], [0], [0], [1], [0, 0, 1, 1], [], []>} : vector<4x64xf32>, vector<64x256xf32>, vector<4x256xf32> -> vector<4x256xf32>
    %51 = arith.addf %44, %50 : vector<4x256xf32>
    %c6 = arith.constant 6 : index
    %c0_51 = arith.constant 0 : index
    %c0_52 = arith.constant 0 : index
    %52 = vector.load %arg4[%c6, %c0_51, %c0_52] : memref<9x4x4xf32, #tpu.memory_space<vmem>>, vector<1x4x4xf32>
    %53 = vector.shape_cast %52 : vector<1x4x4xf32> to vector<4x4xf32>
    %cst_53 = arith.constant dense<0.000000e+00> : vector<4x64xf32>
    %54 = tpu.matmul %53, %8, %cst_53 {dimension_numbers = #tpu.dot_dimension_numbers<[1], [0], [0], [1], [0, 0, 1, 1], [], []>} : vector<4x4xf32>, vector<4x64xf32>, vector<4x64xf32> -> vector<4x64xf32>
    %c6_54 = arith.constant 6 : index
    %c0_55 = arith.constant 0 : index
    %c0_56 = arith.constant 0 : index
    %55 = vector.load %arg5[%c6_54, %c0_55, %c0_56] : memref<9x64x256xf32, #tpu.memory_space<vmem>>, vector<1x64x256xf32>
    %56 = vector.shape_cast %55 : vector<1x64x256xf32> to vector<64x256xf32>
    %cst_57 = arith.constant dense<0.000000e+00> : vector<4x256xf32>
    %57 = tpu.matmul %54, %56, %cst_57 {dimension_numbers = #tpu.dot_dimension_numbers<[1], [0], [0], [1], [0, 0, 1, 1], [], []>} : vector<4x64xf32>, vector<64x256xf32>, vector<4x256xf32> -> vector<4x256xf32>
    %58 = arith.addf %51, %57 : vector<4x256xf32>
    %c7 = arith.constant 7 : index
    %c0_58 = arith.constant 0 : index
    %c0_59 = arith.constant 0 : index
    %59 = vector.load %arg4[%c7, %c0_58, %c0_59] : memref<9x4x4xf32, #tpu.memory_space<vmem>>, vector<1x4x4xf32>
    %60 = vector.shape_cast %59 : vector<1x4x4xf32> to vector<4x4xf32>
    %cst_60 = arith.constant dense<0.000000e+00> : vector<4x64xf32>
    %61 = tpu.matmul %60, %8, %cst_60 {dimension_numbers = #tpu.dot_dimension_numbers<[1], [0], [0], [1], [0, 0, 1, 1], [], []>} : vector<4x4xf32>, vector<4x64xf32>, vector<4x64xf32> -> vector<4x64xf32>
    %c7_61 = arith.constant 7 : index
    %c0_62 = arith.constant 0 : index
    %c0_63 = arith.constant 0 : index
    %62 = vector.load %arg5[%c7_61, %c0_62, %c0_63] : memref<9x64x256xf32, #tpu.memory_space<vmem>>, vector<1x64x256xf32>
    %63 = vector.shape_cast %62 : vector<1x64x256xf32> to vector<64x256xf32>
    %cst_64 = arith.constant dense<0.000000e+00> : vector<4x256xf32>
    %64 = tpu.matmul %61, %63, %cst_64 {dimension_numbers = #tpu.dot_dimension_numbers<[1], [0], [0], [1], [0, 0, 1, 1], [], []>} : vector<4x64xf32>, vector<64x256xf32>, vector<4x256xf32> -> vector<4x256xf32>
    %65 = arith.addf %58, %64 : vector<4x256xf32>
    %c8 = arith.constant 8 : index
    %c0_65 = arith.constant 0 : index
    %c0_66 = arith.constant 0 : index
    %66 = vector.load %arg4[%c8, %c0_65, %c0_66] : memref<9x4x4xf32, #tpu.memory_space<vmem>>, vector<1x4x4xf32>
    %67 = vector.shape_cast %66 : vector<1x4x4xf32> to vector<4x4xf32>
    %cst_67 = arith.constant dense<0.000000e+00> : vector<4x64xf32>
    %68 = tpu.matmul %67, %8, %cst_67 {dimension_numbers = #tpu.dot_dimension_numbers<[1], [0], [0], [1], [0, 0, 1, 1], [], []>} : vector<4x4xf32>, vector<4x64xf32>, vector<4x64xf32> -> vector<4x64xf32>
    %c8_68 = arith.constant 8 : index
    %c0_69 = arith.constant 0 : index
    %c0_70 = arith.constant 0 : index
    %69 = vector.load %arg5[%c8_68, %c0_69, %c0_70] : memref<9x64x256xf32, #tpu.memory_space<vmem>>, vector<1x64x256xf32>
    %70 = vector.shape_cast %69 : vector<1x64x256xf32> to vector<64x256xf32>
    %cst_71 = arith.constant dense<0.000000e+00> : vector<4x256xf32>
    %71 = tpu.matmul %68, %70, %cst_71 {dimension_numbers = #tpu.dot_dimension_numbers<[1], [0], [0], [1], [0, 0, 1, 1], [], []>} : vector<4x64xf32>, vector<64x256xf32>, vector<4x256xf32> -> vector<4x256xf32>
    %72 = arith.addf %65, %71 : vector<4x256xf32>
    %c0_72 = arith.constant 0 : index
    %c0_73 = arith.constant 0 : index
    %73 = vector.load %arg6[%c0_72, %c0_73] : memref<4x1xf32, #tpu.memory_space<vmem>>, vector<4x1xf32>
    %74 = vector.broadcast %73 : vector<4x1xf32> to vector<4x256xf32>
    %75 = arith.addf %72, %74 : vector<4x256xf32>
    %cst_74 = arith.constant 0.000000e+00 : f32
    %76 = vector.broadcast %cst_74 : f32 to vector<4x256xf32>
    %77 = arith.maximumf %75, %76 : vector<4x256xf32>
    %c0_75 = arith.constant 0 : index
    %c0_76 = arith.constant 0 : index
    %78 = vector.load %arg7[%c0_75, %c0_76] : memref<8x4xf32, #tpu.memory_space<vmem>>, vector<8x4xf32>
    %cst_77 = arith.constant dense<0.000000e+00> : vector<8x256xf32>
    %79 = tpu.matmul %78, %77, %cst_77 {dimension_numbers = #tpu.dot_dimension_numbers<[1], [0], [0], [1], [0, 0, 1, 1], [], []>} : vector<8x4xf32>, vector<4x256xf32>, vector<8x256xf32> -> vector<8x256xf32>
    %c0_78 = arith.constant 0 : index
    %c0_79 = arith.constant 0 : index
    %80 = vector.load %arg8[%c0_78, %c0_79] : memref<8x1xf32, #tpu.memory_space<vmem>>, vector<8x1xf32>
    %81 = vector.broadcast %80 : vector<8x1xf32> to vector<8x256xf32>
    %82 = arith.addf %79, %81 : vector<8x256xf32>
    %cst_80 = arith.constant 0.000000e+00 : f32
    %83 = vector.broadcast %cst_80 : f32 to vector<8x256xf32>
    %84 = arith.maximumf %82, %83 : vector<8x256xf32>
    %c0_81 = arith.constant 0 : index
    %c0_82 = arith.constant 0 : index
    %c0_83 = arith.constant 0 : index
    %85 = vector.load %arg9[%c0_81, %c0_82, %c0_83] : memref<1x8x256xf32, #tpu.memory_space<vmem>>, vector<1x8x256xf32>
    %86 = vector.shape_cast %85 : vector<1x8x256xf32> to vector<8x256xf32>
    %87 = vector.shape_cast %84 : vector<8x256xf32> to vector<1x8x256xf32>
    tpu.vector_store %arg9[%c0_81, %c0_82, %c0_83], %87 {strides = array<i32>} : memref<1x8x256xf32, #tpu.memory_space<vmem>>, vector<1x8x256xf32>,
    return
  }
  func.func @transform_0(%arg0: i32) -> (i32, i32, i32) {
    %c0_i32 = arith.constant 0 : i32
    %c0_i32_0 = arith.constant 0 : i32
    %c0_i32_1 = arith.constant 0 : i32
    return %arg0, %c0_i32, %c0_i32_0 : i32, i32, i32
  }
  func.func @transform_1(%arg0: i32) -> (i32, i32) {
    %c0_i32 = arith.constant 0 : i32
    %c0_i32_0 = arith.constant 0 : i32
    %c0_i32_1 = arith.constant 0 : i32
    return %c0_i32, %c0_i32_0 : i32, i32
  }
  func.func @transform_2(%arg0: i32) -> (i32, i32) {
    %c0_i32 = arith.constant 0 : i32
    %c0_i32_0 = arith.constant 0 : i32
    %c0_i32_1 = arith.constant 0 : i32
    return %c0_i32, %c0_i32_0 : i32, i32
  }
  func.func @transform_3(%arg0: i32) -> (i32, i32, i32) {
    %c0_i32 = arith.constant 0 : i32
    %c0_i32_0 = arith.constant 0 : i32
    %c0_i32_1 = arith.constant 0 : i32
    %c0_i32_2 = arith.constant 0 : i32
    return %c0_i32, %c0_i32_0, %c0_i32_1 : i32, i32, i32
  }
  func.func @transform_4(%arg0: i32) -> (i32, i32, i32) {
    %c0_i32 = arith.constant 0 : i32
    %c0_i32_0 = arith.constant 0 : i32
    %c0_i32_1 = arith.constant 0 : i32
    %c0_i32_2 = arith.constant 0 : i32
    return %c0_i32, %c0_i32_0, %c0_i32_1 : i32, i32, i32
  }
  func.func @transform_5(%arg0: i32) -> (i32, i32) {
    %c0_i32 = arith.constant 0 : i32
    %c0_i32_0 = arith.constant 0 : i32
    %c0_i32_1 = arith.constant 0 : i32
    return %c0_i32, %c0_i32_0 : i32, i32
  }
  func.func @transform_6(%arg0: i32) -> (i32, i32) {
    %c0_i32 = arith.constant 0 : i32
    %c0_i32_0 = arith.constant 0 : i32
    %c0_i32_1 = arith.constant 0 : i32
    return %c0_i32, %c0_i32_0 : i32, i32
  }
  func.func @transform_7(%arg0: i32) -> (i32, i32) {
    %c0_i32 = arith.constant 0 : i32
    %c0_i32_0 = arith.constant 0 : i32
    %c0_i32_1 = arith.constant 0 : i32
    return %c0_i32, %c0_i32_0 : i32, i32
  }
  func.func @transform_8(%arg0: i32) -> (i32, i32, i32) {
    %c0_i32 = arith.constant 0 : i32
    %c0_i32_0 = arith.constant 0 : i32
    %c0_i32_1 = arith.constant 0 : i32
    return %arg0, %c0_i32, %c0_i32_0 : i32, i32, i32
  }
}

</mosaic_0001>

<llo_original>
// kernel: decoder_forward.1
$region0: #{decoder_forward.1}
  #allocation0 [shape = 'u32[]', space=smem, size = 0x4, offset = 0x4, fixed_abs, tag = 'smem constant byte address 0x4 - core index']
  #allocation1 [shape = 'u32[144,128]{1,0:T(1,128)}', space=vmem, size = 0x12000, scoped, tag = 'internal scratch']
  %s0 = inlined_call_operand.vmem [shape: f32[2,16,64], index: 0, kind: input, shape index: {}]
  %s1 = inlined_call_operand.vmem [shape: f32[4,16], index: 1, kind: input, shape index: {}]
  %s2 = inlined_call_operand.vmem [shape: f32[4,1], index: 2, kind: input, shape index: {}]
  %s3 = inlined_call_operand.vmem [shape: f32[9,4,4], index: 3, kind: input, shape index: {}]
  %s4 = inlined_call_operand.hbm [shape: f32[9,64,256], index: 4, kind: input, shape index: {}]
  %s5 = inlined_call_operand.vmem [shape: f32[4,1], index: 5, kind: input, shape index: {}]
  %s6 = inlined_call_operand.vmem [shape: f32[8,4], index: 6, kind: input, shape index: {}]
  %s7 = inlined_call_operand.vmem [shape: f32[8,1], index: 7, kind: input, shape index: {}]
  %s8 = inlined_call_operand.vmem [shape: f32[2,8,256], index: 8, kind: output, shape index: {}]
  %s9 = sld [smem:[#allocation0]]
  $region69: #{decoder_forward.1} parent=0
    _
  %s11 = ssub.s32 1, %s9
  %s12 = scalar_select 0, %s11, %s9
  $region1: #{decoder_forward.1} parent=0
    #allocation2 [shape = 'u8[589824]{0}', space=vmem, size = 0x90000, scoped, tag = 'input window, operand 4, single buffered']
    #allocation3 [shape = 's32[2]{0}', space=sflag, size = 0x8, scoped, tag = 'scoped memory for decoder_forward.1']
    %13 = vsyncpa [#allocation3], 0
    loop: start=0, step=1, limit=4
    $region2: #{decoder_forward.1} parent=1 // loop_pre_header
      _
    $region3: #{decoder_forward.1} parent=1 // loop_header
      %s15 = sphi 0, %s19
      %p16 = scmp.ge.s32.totalorder %s15, 4
      %s25 = sphi 0, %s27
      %s28 = sphi 0, %s25
      %s29 = sphi 0, %s28
      %s45 = sphi 0, %s29
      %s49 = sphi 0, %s49
      %s51 = sphi 0, %s49
      %s52 = sphi 0, %s51
      %s66 = sphi 0, %s52
      %s70 = sphi 0, %s70
      %s72 = sphi 0, %s70
      %s73 = sphi 0, %s72
      %s87 = sphi 0, %s73
      %s91 = sphi 0, %s91
      %s93 = sphi 0, %s91
      %s94 = sphi 0, %s93
      %s108 = sphi 0, %s94
      %s112 = sphi 0, %s112
      %s114 = sphi 0, %s112
      %s115 = sphi 0, %s114
      %s129 = sphi 0, %s115
      %s133 = sphi 0, %s133
      %s135 = sphi 0, %s133
      %s136 = sphi 0, %s135
      %s150 = sphi 0, %s136
      %s154 = sphi 0, %s154
      %s156 = sphi 0, %s154
      %s157 = sphi 0, %s156
      %s171 = sphi 0, %s157
      %s175 = sphi 0, %s175
      %s177 = sphi 0, %s175
      %s178 = sphi 0, %s177
      %s192 = sphi 0, %s178
      %s198 = sphi 0, %s200
      %s201 = sphi 0, %s198
      %s202 = sphi 0, %s201
      %s218 = sphi 0, %s202
    $region4: #{decoder_forward.1} parent=1 // loop_header_branch
      %18 = sbr.rel (%p16) target = $region8
    $region5: #{decoder_forward.1} parent=1 // loop_body
      %s20 = ssub.s32 %s15, 1
      %s21 = ssub.s32 %s15, 2
      %s22 = sadd.s32 %s15, 1
      %s23 = ssub.s32 %s15, %s22
      %p24 = scmp.eq.s32.totalorder %s23, 0
      %s26 = sadd.s32 %s25, 1
      %s27 = scalar_select %p24, %s25, %s26
      %p30 = pneg %p24
      %p31 = scmp.eq.s32.totalorder %s15, 1
      %p32 = por %p30, %p31
      %p33 = scmp.ne.s32.totalorder %s25, %s28
      %p34 = scmp.eq.s32.totalorder %s15, 0
      %p35 = por %p33, %p34
      %p36 = scmp.ne.s32.totalorder %s25, %s28
      %p37 = scmp.eq.s32.totalorder %s20, 1
      %p38 = por %p36, %p37
      %p39 = scmp.ne.s32.totalorder %s28, %s29
      %p40 = scmp.eq.s32.totalorder %s20, 0
      %p41 = por %p39, %p40
      %p42 = scmp.ne.s32.totalorder %s28, %s29
      %p43 = scmp.eq.s32.totalorder %s21, 1
      %p44 = por %p42, %p43
      %p46 = scmp.ne.s32.totalorder %s29, %s45
      %p47 = scmp.eq.s32.totalorder %s21, 0
      %p48 = por %p46, %p47
      %s50 = sadd.s32 %s49, 1
      %p53 = scmp.eq.s32.totalorder %s15, 1
      %p54 = scmp.ne.s32.totalorder %s49, %s51
      %p55 = scmp.eq.s32.totalorder %s15, 0
      %p56 = por %p54, %p55
      %p57 = scmp.ne.s32.totalorder %s49, %s51
      %p58 = scmp.eq.s32.totalorder %s20, 1
      %p59 = por %p57, %p58
      %p60 = scmp.ne.s32.totalorder %s51, %s52
      %p61 = scmp.eq.s32.totalorder %s20, 0
      %p62 = por %p60, %p61
      %p63 = scmp.ne.s32.totalorder %s51, %s52
      %p64 = scmp.eq.s32.totalorder %s21, 1
      %p65 = por %p63, %p64
      %p67 = scmp.ne.s32.totalorder %s52, %s66
      %p68 = scmp.eq.s32.totalorder %s21, 0
      %p69 = por %p67, %p68
      %s71 = sadd.s32 %s70, 1
      %p74 = scmp.eq.s32.totalorder %s15, 1
      %p75 = scmp.ne.s32.totalorder %s70, %s72
      %p76 = scmp.eq.s32.totalorder %s15, 0
      %p77 = por %p75, %p76
      %p78 = scmp.ne.s32.totalorder %s70, %s72
      %p79 = scmp.eq.s32.totalorder %s20, 1
      %p80 = por %p78, %p79
      %p81 = scmp.ne.s32.totalorder %s72, %s73
      %p82 = scmp.eq.s32.totalorder %s20, 0
      %p83 = por %p81, %p82
      %p84 = scmp.ne.s32.totalorder %s72, %s73
      %p85 = scmp.eq.s32.totalorder %s21, 1
      %p86 = por %p84, %p85
      %p88 = scmp.ne.s32.totalorder %s73, %s87
      %p89 = scmp.eq.s32.totalorder %s21, 0
      %p90 = por %p88, %p89
      %s92 = sadd.s32 %s91, 1
      %p95 = scmp.eq.s32.totalorder %s15, 1
      %p96 = scmp.ne.s32.totalorder %s91, %s93
      %p97 = scmp.eq.s32.totalorder %s15, 0
      %p98 = por %p96, %p97
      %p99 = scmp.ne.s32.totalorder %s91, %s93
      %p100 = scmp.eq.s32.totalorder %s20, 1
      %p101 = por %p99, %p100
      %p102 = scmp.ne.s32.totalorder %s93, %s94
      %p103 = scmp.eq.s32.totalorder %s20, 0
      %p104 = por %p102, %p103
      %p105 = scmp.ne.s32.totalorder %s93, %s94
      %p106 = scmp.eq.s32.totalorder %s21, 1
      %p107 = por %p105, %p106
      %p109 = scmp.ne.s32.totalorder %s94, %s108
      %p110 = scmp.eq.s32.totalorder %s21, 0
      %p111 = por %p109, %p110
      %s113 = sadd.s32 %s112, 1
      %p116 = scmp.eq.s32.totalorder %s15, 1
      %p117 = scmp.ne.s32.totalorder %s112, %s114
      %p118 = scmp.eq.s32.totalorder %s15, 0
      %p119 = por %p117, %p118
      %p120 = scmp.ne.s32.totalorder %s112, %s114
      %p121 = scmp.eq.s32.totalorder %s20, 1
      %p122 = por %p120, %p121
      %p123 = scmp.ne.s32.totalorder %s114, %s115
      %p124 = scmp.eq.s32.totalorder %s20, 0
      %p125 = por %p123, %p124
      %p126 = scmp.ne.s32.totalorder %s114, %s115
      %p127 = scmp.eq.s32.totalorder %s21, 1
      %p128 = por %p126, %p127
      %p130 = scmp.ne.s32.totalorder %s115, %s129
      %p131 = scmp.eq.s32.totalorder %s21, 0
      %p132 = por %p130, %p131
      %s134 = sadd.s32 %s133, 1
      %p137 = scmp.eq.s32.totalorder %s15, 1
      %p138 = scmp.ne.s32.totalorder %s133, %s135
      %p139 = scmp.eq.s32.totalorder %s15, 0
      %p140 = por %p138, %p139
      %p141 = scmp.ne.s32.totalorder %s133, %s135
      %p142 = scmp.eq.s32.totalorder %s20, 1
      %p143 = por %p141, %p142
      %p144 = scmp.ne.s32.totalorder %s135, %s136
      %p145 = scmp.eq.s32.totalorder %s20, 0
      %p146 = por %p144, %p145
      %p147 = scmp.ne.s32.totalorder %s135, %s136
      %p148 = scmp.eq.s32.totalorder %s21, 1
      %p149 = por %p147, %p148
      %p151 = scmp.ne.s32.totalorder %s136, %s150
      %p152 = scmp.eq.s32.totalorder %s21, 0
      %p153 = por %p151, %p152
      %s155 = sadd.s32 %s154, 1
      %p158 = scmp.eq.s32.totalorder %s15, 1
      %p159 = scmp.ne.s32.totalorder %s154, %s156
      %p160 = scmp.eq.s32.totalorder %s15, 0
      %p161 = por %p159, %p160
      %p162 = scmp.ne.s32.totalorder %s154, %s156
      %p163 = scmp.eq.s32.totalorder %s20, 1
      %p164 = por %p162, %p163
      %p165 = scmp.ne.s32.totalorder %s156, %s157
      %p166 = scmp.eq.s32.totalorder %s20, 0
      %p167 = por %p165, %p166
      %p168 = scmp.ne.s32.totalorder %s156, %s157
      %p169 = scmp.eq.s32.totalorder %s21, 1
      %p170 = por %p168, %p169
      %p172 = scmp.ne.s32.totalorder %s157, %s171
      %p173 = scmp.eq.s32.totalorder %s21, 0
      %p174 = por %p172, %p173
      %s176 = sadd.s32 %s175, 1
      %p179 = scmp.eq.s32.totalorder %s15, 1
      %p180 = scmp.ne.s32.totalorder %s175, %s177
      %p181 = scmp.eq.s32.totalorder %s15, 0
      %p182 = por %p180, %p181
      %p183 = scmp.ne.s32.totalorder %s175, %s177
      %p184 = scmp.eq.s32.totalorder %s20, 1
      %p185 = por %p183, %p184
      %p186 = scmp.ne.s32.totalorder %s177, %s178
      %p187 = scmp.eq.s32.totalorder %s20, 0
      %p188 = por %p186, %p187
      %p189 = scmp.ne.s32.totalorder %s177, %s178
      %p190 = scmp.eq.s32.totalorder %s21, 1
      %p191 = por %p189, %p190
      %p193 = scmp.ne.s32.totalorder %s178, %s192
      %p194 = scmp.eq.s32.totalorder %s21, 0
      %p195 = por %p193, %p194
      %s196 = ssub.s32 %s15, %s22
      %p197 = scmp.eq.s32.totalorder %s196, 0
      %s199 = sadd.s32 %s198, 1
      %s200 = scalar_select %p197, %s198, %s199
      %p203 = pneg %p197
      %p204 = scmp.eq.s32.totalorder %s15, 1
      %p205 = por %p203, %p204
      %p206 = scmp.ne.s32.totalorder %s198, %s201
      %p207 = scmp.eq.s32.totalorder %s15, 0
      %p208 = por %p206, %p207
      %p209 = scmp.ne.s32.totalorder %s198, %s201
      %p210 = scmp.eq.s32.totalorder %s20, 1
      %p211 = por %p209, %p210
      %p212 = scmp.ne.s32.totalorder %s201, %s202
      %p213 = scmp.eq.s32.totalorder %s20, 0
      %p214 = por %p212, %p213
      %p215 = scmp.ne.s32.totalorder %s201, %s202
      %p216 = scmp.eq.s32.totalorder %s21, 1
      %p217 = por %p215, %p216
      %p219 = scmp.ne.s32.totalorder %s202, %s218
      %p220 = scmp.eq.s32.totalorder %s21, 0
      %p221 = por %p219, %p220
      %p222 = scmp.le.s32.totalorder 1, %s15
      %p223 = scmp.lt.s32.totalorder %s15, 3
      %p224 = pnand %p222, %p223
      %p225 = pneg %p224
      // Predicated region
      $region9: #{decoder_forward.1} parent=5 // pred_check
        _
      $region10: #{decoder_forward.1} parent=5 // pred_check_branch
        %227 = sbr.rel (%p224) target = $region12
      $region11: #{decoder_forward.1} parent=5 // pred_region
        %s228 = ssub.s32 %s15, 1
        // Predicated region
        $region13: #{decoder_forward.1} parent=11 // pred_check
          %p229 = pneg %p62
        $region14: #{decoder_forward.1} parent=11 // pred_check_branch
          %231 = sbr.rel (%p229) target = $region16
        $region15: #{decoder_forward.1} parent=11 // pred_region
          _
        $region16: #{decoder_forward.1} parent=11 // pred_fallthru
          _
        // Predicated region
        $region17: #{decoder_forward.1} parent=11 // pred_check
          %p232 = pneg %p83
        $region18: #{decoder_forward.1} parent=11 // pred_check_branch
          %234 = sbr.rel (%p232) target = $region20
        $region19: #{decoder_forward.1} parent=11 // pred_region
          _
        $region20: #{decoder_forward.1} parent=11 // pred_fallthru
          _
        // Predicated region
        $region21: #{decoder_forward.1} parent=11 // pred_check
          %p235 = pneg %p104
        $region22: #{decoder_forward.1} parent=11 // pred_check_branch
          %237 = sbr.rel (%p235) target = $region24
        $region23: #{decoder_forward.1} parent=11 // pred_region
          _
        $region24: #{decoder_forward.1} parent=11 // pred_fallthru
          _
        // Predicated region
        $region25: #{decoder_forward.1} parent=11 // pred_check
          %p238 = pneg %p125
        $region26: #{decoder_forward.1} parent=11 // pred_check_branch
          %240 = sbr.rel (%p238) target = $region28
        $region27: #{decoder_forward.1} parent=11 // pred_region
          %s242 = ssub.s32 18432, 18432
          %243 = vsyncadd [#allocation3], %s242
          %s244 = sshll.u32 [#allocation2], 4
          %s245 = int_to_ptr.vmem [resolvable:$true] %s244
          %250 = dma.hbm_to_vmem [thread:$0]  %s4, 18432, %s245, [#allocation3], 256, 256, 16
        $region28: #{decoder_forward.1} parent=11 // pred_fallthru
          _
        // Predicated region
        $region29: #{decoder_forward.1} parent=11 // pred_check
          %p251 = pneg %p146
        $region30: #{decoder_forward.1} parent=11 // pred_check_branch
          %253 = sbr.rel (%p251) target = $region32
        $region31: #{decoder_forward.1} parent=11 // pred_region
          _
        $region32: #{decoder_forward.1} parent=11 // pred_fallthru
          _
        // Predicated region
        $region33: #{decoder_forward.1} parent=11 // pred_check
          %p254 = pneg %p167
        $region34: #{decoder_forward.1} parent=11 // pred_check_branch
          %256 = sbr.rel (%p254) target = $region36
        $region35: #{decoder_forward.1} parent=11 // pred_region
          _
        $region36: #{decoder_forward.1} parent=11 // pred_fallthru
          _
        // Predicated region
        $region37: #{decoder_forward.1} parent=11 // pred_check
          %p257 = pneg %p188
        $region38: #{decoder_forward.1} parent=11 // pred_check_branch
          %259 = sbr.rel (%p257) target = $region40
        $region39: #{decoder_forward.1} parent=11 // pred_region
          _
        $region40: #{decoder_forward.1} parent=11 // pred_fallthru
          _
      $region12: #{decoder_forward.1} parent=5 // pred_fallthru
        _
      %p260 = scmp.lt.s32.totalorder %s15, 2
      // Predicated region
      $region41: #{decoder_forward.1} parent=5 // pred_check
        %p261 = pneg %p260
      $region42: #{decoder_forward.1} parent=5 // pred_check_branch
        %263 = sbr.rel (%p261) target = $region44
      $region43: #{decoder_forward.1} parent=5 // pred_region
        // Predicated region
        $region45: #{decoder_forward.1} parent=43 // pred_check
          %p264 = pneg %p35
        $region46: #{decoder_forward.1} parent=43 // pred_check_branch
          %266 = sbr.rel (%p264) target = $region48
        $region47: #{decoder_forward.1} parent=43 // pred_region
          %p267 = scmp.lt.s32.totalorder %s15, 1
          %s268 = scalar_select %p267, %s15, 1
          %s269 = smul.addr %s268, 2
          %s270 = smul.addr %s269, 8
          %s271 = scalar_lea.vmem %s0, %s270
        $region48: #{decoder_forward.1} parent=43 // pred_fallthru
          _
      $region44: #{decoder_forward.1} parent=5 // pred_fallthru
        _
      %p272 = scmp.le.s32.totalorder 1, %s15
      %p273 = scmp.lt.s32.totalorder %s15, 3
      %p274 = pnand %p272, %p273
      %p275 = pneg %p274
      // Predicated region
      $region49: #{decoder_forward.1} parent=5 // pred_check
        _
      $region50: #{decoder_forward.1} parent=5 // pred_check_branch
        %277 = sbr.rel (%p274) target = $region52
      $region51: #{decoder_forward.1} parent=5 // pred_region
        %s278 = ssub.s32 %s15, 1
        // Predicated region
        $region53: #{decoder_forward.1} parent=51 // pred_check
          %p279 = pneg %p125
        $region54: #{decoder_forward.1} parent=51 // pred_check_branch
          %281 = sbr.rel (%p279) target = $region56
        $region55: #{decoder_forward.1} parent=51 // pred_region
          %282 = dma.done [#allocation3], 18432
        $region56: #{decoder_forward.1} parent=51 // pred_fallthru
          _
        %p283 = scmp.lt.s32.totalorder %s20, 1
        %s284 = scalar_select %p283, %s20, 1
        %s285 = smul.addr %s284, 2
        %s286 = smul.addr %s285, 8
        %s287 = scalar_lea.vmem %s0, %s286
        %p288 = pneg %p41
        %p289 = pneg %p38
        %p290 = pneg %p62
        %p291 = pneg %p59
        %p292 = pneg %p83
        %p293 = pneg %p80
        %p294 = pneg %p104
        %p295 = pneg %p101
        %p296 = pneg %p125
        %p297 = pneg %p122
        %p298 = pneg %p146
        %p299 = pneg %p143
        %p300 = pneg %p167
        %p301 = pneg %p164
        %p302 = pneg %p188
        %p303 = pneg %p185
        %p304 = pneg %p214
        %p305 = pneg %p211
        %p306 = scmp.lt.s32.totalorder %s20, 1
        %s307 = scalar_select %p306, %s20, 1
        %s308 = smul.addr %s307, 2
        %s309 = smul.addr %s308, 8
        %s310 = scalar_lea.vmem %s8, %s309
        %p311 = scmp.lt.s32.totalorder %s20, 1
        %s312 = scalar_select %p311, %s20, 1
        %s313 = smul.addr %s312, 2
        %s314 = smul.addr %s313, 8
        %s315 = scalar_lea.vmem %s0, %s314
        %p316 = scmp.lt.s32.totalorder %s20, 1
        %s317 = scalar_select %p316, %s20, 1
        %s318 = smul.addr %s317, 2
        %s319 = smul.addr %s318, 8
        %s320 = scalar_lea.vmem %s8, %s319
        %v321 = vld [vmem:[%s1] sm:$0xf]
        %v322 = vld [vmem:[%s315] sm:$0xff]
        %v323 = vld [vmem:[%s315 + $0x8] sm:$0xff]
        %v324 = vld [vmem:[%s2] sm:$0xf]
        %326 = vset.pattern.permute.xlu0 0
        %327 = vperm.xlu0 %326, %v324
        %v328 = vpop.permute.xlu0 %327
        %vm330 = vcmask 130048
        %v332 = vsel %vm330, %v321, 0
        %334 = vmatprep.subr.mxu0 0.0
        %335 = vmatpush1.msra.mxu0 %v322
        %336 = vmatprep.subr.mxu0 0.0
        %337 = vmatpush1.msra.mxu0 %v323
        %338 = vmatprep.subr.mxu0 0.0
        %339 = vmatpush1.msra.mxu0 0.0
        %340 = vmatprep.subr.mxu0 0.0
        %341 = vmatpush1.msra.mxu0 0.0
        %342 = vmatprep.subr.mxu0 0.0
        %343 = vmatpush1.msra.mxu0 0.0
        %344 = vmatprep.subr.mxu0 0.0
        %345 = vmatpush1.msra.mxu0 0.0
        %346 = vmatprep.subr.mxu0 0.0
        %347 = vmatpush1.msra.mxu0 0.0
        %348 = vmatprep.subr.mxu0 0.0
        %349 = vmatpush1.msra.mxu0 0.0
        %350 = vmatprep.subr.mxu0 0.0
        %351 = vmatpush1.msra.mxu0 0.0
        %352 = vmatprep.subr.mxu0 0.0
        %353 = vmatpush1.msra.mxu0 0.0
        %354 = vmatprep.subr.mxu0 0.0
        %355 = vmatpush1.msra.mxu0 0.0
        %356 = vmatprep.subr.mxu0 0.0
        %357 = vmatpush1.msra.mxu0 0.0
        %358 = vmatprep.subr.mxu0 0.0
        %359 = vmatpush1.msra.mxu0 0.0
        %360 = vmatprep.subr.mxu0 0.0
        %361 = vmatpush1.msra.mxu0 0.0
        %362 = vmatprep.subr.mxu0 0.0
        %363 = vmatpush1.msra.mxu0 0.0
        %364 = vmatprep.subr.mxu0 0.0
        %365 = vmatpush1.msra.mxu0 0.0
        %366 = vmatprep.subr.mxu0 0.0
        %367 = vmatpush1.msra.mxu0 0.0
        %368 = vmatprep.subr.mxu0 0.0
        %369 = vmatpush1.msra.mxu0 0.0
        %370 = vmatprep.subr.mxu0 0.0
        %371 = vmatpush1.msra.mxu0 0.0
        %372 = vmatprep.subr.mxu0 0.0
        %373 = vmatpush1.msra.mxu0 0.0
        %374 = vmatprep.subr.mxu0 0.0
        %375 = vmatpush1.msra.mxu0 0.0
        %376 = vmatprep.subr.mxu0 0.0
        %377 = vmatpush1.msra.mxu0 0.0
        %378 = vmatprep.subr.mxu0 0.0
        %379 = vmatpush1.msra.mxu0 0.0
        %380 = vmatprep.subr.mxu0 0.0
        %381 = vmatpush1.msra.mxu0 0.0
        %382 = vmatprep.subr.mxu0 0.0
        %383 = vmatpush1.msra.mxu0 0.0
        %384 = vmatprep.subr.mxu0 0.0
        %385 = vmatpush1.msra.mxu0 0.0
        %386 = vmatprep.subr.mxu0 0.0
        %387 = vmatpush1.msra.mxu0 0.0
        %388 = vmatprep.subr.mxu0 0.0
        %389 = vmatpush1.msra.mxu0 0.0
        %390 = vmatprep.subr.mxu0 0.0
        %391 = vmatpush1.msra.mxu0 0.0
        %392 = vmatprep.subr.mxu0 0.0
        %393 = vmatpush1.msra.mxu0 0.0
        %394 = vmatprep.subr.mxu0 0.0
        %395 = vmatpush1.msra.mxu0 0.0
        %396 = vmatprep.subr.mxu0 0.0
        %397 = vmatpush1.msra.mxu0 0.0
        %398 = vmatprep.mubr.f32.mxu0 0.0
        %399 = vmatmul.mubr.f32.gmra.mrb[0].mxu0 %v332
        %v400 = vpop.f32.mrb[0].mxu0
        %v401 = vadd.f32 %v328, %v400
        %v402 = vpop.f32.mrb[0].mxu0
        %403 = vdwg.mxu0
        %v404 = vmax.f32 %v401, 0.0
        %v405 = vld [vmem:[%s3] sm:$0xf]
        %vm406 = vcmask 31744
        %v408 = vsel %vm406, %v405, 0
        %vm410 = vcmask 1043456
        %v412 = vsel %vm410, %v404, 0
        %414 = vmatprep.subr.mxu0 0.0
        %415 = vmatpush1.msra.mxu0 %v412
        %416 = vmatprep.subr.mxu0 0.0
        %417 = vmatpush1.msra.mxu0 0.0
        %418 = vmatprep.subr.mxu0 0.0
        %419 = vmatpush1.msra.mxu0 0.0
        %420 = vmatprep.subr.mxu0 0.0
        %421 = vmatpush1.msra.mxu0 0.0
        %422 = vmatprep.subr.mxu0 0.0
        %423 = vmatpush1.msra.mxu0 0.0
        %424 = vmatprep.subr.mxu0 0.0
        %425 = vmatpush1.msra.mxu0 0.0
        %426 = vmatprep.subr.mxu0 0.0
        %427 = vmatpush1.msra.mxu0 0.0
        %428 = vmatprep.subr.mxu0 0.0
        %429 = vmatpush1.msra.mxu0 0.0
        %430 = vmatprep.subr.mxu0 0.0
        %431 = vmatpush1.msra.mxu0 0.0
        %432 = vmatprep.subr.mxu0 0.0
        %433 = vmatpush1.msra.mxu0 0.0
        %434 = vmatprep.subr.mxu0 0.0
        %435 = vmatpush1.msra.mxu0 0.0
        %436 = vmatprep.subr.mxu0 0.0
        %437 = vmatpush1.msra.mxu0 0.0
        %438 = vmatprep.subr.mxu0 0.0
        %439 = vmatpush1.msra.mxu0 0.0
        %440 = vmatprep.subr.mxu0 0.0
        %441 = vmatpush1.msra.mxu0 0.0
        %442 = vmatprep.subr.mxu0 0.0
        %443 = vmatpush1.msra.mxu0 0.0
        %444 = vmatprep.subr.mxu0 0.0
        %445 = vmatpush1.msra.mxu0 0.0
        %446 = vmatprep.subr.mxu0 0.0
        %447 = vmatpush1.msra.mxu0 0.0
        %448 = vmatprep.subr.mxu0 0.0
        %449 = vmatpush1.msra.mxu0 0.0
        %450 = vmatprep.subr.mxu0 0.0
        %451 = vmatpush1.msra.mxu0 0.0
        %452 = vmatprep.subr.mxu0 0.0
        %453 = vmatpush1.msra.mxu0 0.0
        %454 = vmatprep.subr.mxu0 0.0
        %455 = vmatpush1.msra.mxu0 0.0
        %456 = vmatprep.subr.mxu0 0.0
        %457 = vmatpush1.msra.mxu0 0.0
        %458 = vmatprep.subr.mxu0 0.0
        %459 = vmatpush1.msra.mxu0 0.0
        %460 = vmatprep.subr.mxu0 0.0
        %461 = vmatpush1.msra.mxu0 0.0
        %462 = vmatprep.subr.mxu0 0.0
        %463 = vmatpush1.msra.mxu0 0.0
        %464 = vmatprep.subr.mxu0 0.0
        %465 = vmatpush1.msra.mxu0 0.0
        %466 = vmatprep.subr.mxu0 0.0
        %467 = vmatpush1.msra.mxu0 0.0
        %468 = vmatprep.subr.mxu0 0.0
        %469 = vmatpush1.msra.mxu0 0.0
        %470 = vmatprep.subr.mxu0 0.0
        %471 = vmatpush1.msra.mxu0 0.0
        %472 = vmatprep.subr.mxu0 0.0
        %473 = vmatpush1.msra.mxu0 0.0
        %474 = vmatprep.subr.mxu0 0.0
        %475 = vmatpush1.msra.mxu0 0.0
        %476 = vmatprep.subr.mxu0 0.0
        %477 = vmatpush1.msra.mxu0 0.0
        %478 = vmatprep.mubr.f32.mxu0 0.0
        %479 = vmatmul.mubr.f32.gmra.mrb[0].mxu0 %v408
        %v480 = vpop.f32.mrb[0].mxu0
        %v481 = vadd.f32 0.0, %v480
        %v482 = vpop.f32.mrb[0].mxu0
        %483 = vdwg.mxu0
        %v484 = vld [vmem:[#allocation2] sm:$0xff]
        %v485 = vld [vmem:[#allocation2 + $0x8] sm:$0xff]
        %v486 = vld [vmem:[#allocation2 + $0x10] sm:$0xff]
        %v487 = vld [vmem:[#allocation2 + $0x18] sm:$0xff]
        %v488 = vld [vmem:[#allocation2 + $0x20] sm:$0xff]
        %v489 = vld [vmem:[#allocation2 + $0x28] sm:$0xff]
        %v490 = vld [vmem:[#allocation2 + $0x30] sm:$0xff]
        %v491 = vld [vmem:[#allocation2 + $0x38] sm:$0xff]
        %v492 = vld [vmem:[#allocation2 + $0x40] sm:$0xff]
        %v493 = vld [vmem:[#allocation2 + $0x48] sm:$0xff]
        %v494 = vld [vmem:[#allocation2 + $0x50] sm:$0xff]
        %v495 = vld [vmem:[#allocation2 + $0x58] sm:$0xff]
        %v496 = vld [vmem:[#allocation2 + $0x60] sm:$0xff]
        %v497 = vld [vmem:[#allocation2 + $0x68] sm:$0xff]
        %v498 = vld [vmem:[#allocation2 + $0x70] sm:$0xff]
        %v499 = vld [vmem:[#allocation2 + $0x78] sm:$0xff]
        %s500 = scalar_lea.vmem %s3, 4
        %v501 = vld [vmem:[%s500] sm:$0xf]
        %v503 = vsel %vm406, %v501, 0
        %505 = vmatprep.subr.mxu0 0.0
        %506 = vmatpush1.msra.mxu0 %v412
        %507 = vmatprep.subr.mxu0 0.0
        %508 = vmatpush1.msra.mxu0 0.0
        %509 = vmatprep.subr.mxu0 0.0
        %510 = vmatpush1.msra.mxu0 0.0
        %511 = vmatprep.subr.mxu0 0.0
        %512 = vmatpush1.msra.mxu0 0.0
        %513 = vmatprep.subr.mxu0 0.0
        %514 = vmatpush1.msra.mxu0 0.0
        %515 = vmatprep.subr.mxu0 0.0
        %516 = vmatpush1.msra.mxu0 0.0
        %517 = vmatprep.subr.mxu0 0.0
        %518 = vmatpush1.msra.mxu0 0.0
        %519 = vmatprep.subr.mxu0 0.0
        %520 = vmatpush1.msra.mxu0 0.0
        %521 = vmatprep.subr.mxu0 0.0
        %522 = vmatpush1.msra.mxu0 0.0
        %523 = vmatprep.subr.mxu0 0.0
        %524 = vmatpush1.msra.mxu0 0.0
        %525 = vmatprep.subr.mxu0 0.0
        %526 = vmatpush1.msra.mxu0 0.0
        %527 = vmatprep.subr.mxu0 0.0
        %528 = vmatpush1.msra.mxu0 0.0
        %529 = vmatprep.subr.mxu0 0.0
        %530 = vmatpush1.msra.mxu0 0.0
        %531 = vmatprep.subr.mxu0 0.0
        %532 = vmatpush1.msra.mxu0 0.0
        %533 = vmatprep.subr.mxu0 0.0
        %534 = vmatpush1.msra.mxu0 0.0
        %535 = vmatprep.subr.mxu0 0.0
        %536 = vmatpush1.msra.mxu0 0.0
        %537 = vmatprep.subr.mxu0 0.0
        %538 = vmatpush1.msra.mxu0 0.0
        %539 = vmatprep.subr.mxu0 0.0
        %540 = vmatpush1.msra.mxu0 0.0
        %541 = vmatprep.subr.mxu0 0.0
        %542 = vmatpush1.msra.mxu0 0.0
        %543 = vmatprep.subr.mxu0 0.0
        %544 = vmatpush1.msra.mxu0 0.0
        %545 = vmatprep.subr.mxu0 0.0
        %546 = vmatpush1.msra.mxu0 0.0
        %547 = vmatprep.subr.mxu0 0.0
        %548 = vmatpush1.msra.mxu0 0.0
        %549 = vmatprep.subr.mxu0 0.0
        %550 = vmatpush1.msra.mxu0 0.0
        %551 = vmatprep.subr.mxu0 0.0
        %552 = vmatpush1.msra.mxu0 0.0
        %553 = vmatprep.subr.mxu0 0.0
        %554 = vmatpush1.msra.mxu0 0.0
        %555 = vmatprep.subr.mxu0 0.0
        %556 = vmatpush1.msra.mxu0 0.0
        %557 = vmatprep.subr.mxu0 0.0
        %558 = vmatpush1.msra.mxu0 0.0
        %559 = vmatprep.subr.mxu0 0.0
        %560 = vmatpush1.msra.mxu0 0.0
        %561 = vmatprep.subr.mxu0 0.0
        %562 = vmatpush1.msra.mxu0 0.0
        %563 = vmatprep.subr.mxu0 0.0
        %564 = vmatpush1.msra.mxu0 0.0
        %565 = vmatprep.subr.mxu0 0.0
        %566 = vmatpush1.msra.mxu0 0.0
        %567 = vmatprep.subr.mxu0 0.0
        %568 = vmatpush1.msra.mxu0 0.0
        %569 = vmatprep.mubr.f32.mxu0 0.0
        %570 = vmatmul.mubr.f32.gmra.mrb[0].mxu0 %v503
        %v571 = vpop.f32.mrb[0].mxu0
        %v572 = vadd.f32 0.0, %v571
        %v573 = vpop.f32.mrb[0].mxu0
        %574 = vdwg.mxu0
        %s575 = scalar_lea.vmem [#allocation2], 128
        %v576 = vld [vmem:[%s575] sm:$0xff]
        %v577 = vld [vmem:[%s575 + $0x8] sm:$0xff]
        %v578 = vld [vmem:[%s575 + $0x10] sm:$0xff]
        %v579 = vld [vmem:[%s575 + $0x18] sm:$0xff]
        %v580 = vld [vmem:[%s575 + $0x20] sm:$0xff]
        %v581 = vld [vmem:[%s575 + $0x28] sm:$0xff]
        %v582 = vld [vmem:[%s575 + $0x30] sm:$0xff]
        %v583 = vld [vmem:[%s575 + $0x38] sm:$0xff]
        %v584 = vld [vmem:[%s575 + $0x40] sm:$0xff]
        %v585 = vld [vmem:[%s575 + $0x48] sm:$0xff]
        %v586 = vld [vmem:[%s575 + $0x50] sm:$0xff]
        %v587 = vld [vmem:[%s575 + $0x58] sm:$0xff]
        %v588 = vld [vmem:[%s575 + $0x60] sm:$0xff]
        %v589 = vld [vmem:[%s575 + $0x68] sm:$0xff]
        %v590 = vld [vmem:[%s575 + $0x70] sm:$0xff]
        %v591 = vld [vmem:[%s575 + $0x78] sm:$0xff]
        %vm592 = vcmask 523264
        %v594 = vsel %vm592, %v572, 0
        %596 = vmatprep.subr.mxu0 %v577
        %597 = vmatpush1.msra.mxu0 %v576
        %598 = vmatprep.subr.mxu0 %v579
        %599 = vmatpush1.msra.mxu0 %v578
        %600 = vmatprep.subr.mxu0 %v581
        %601 = vmatpush1.msra.mxu0 %v580
        %602 = vmatprep.subr.mxu0 %v583
        %603 = vmatpush1.msra.mxu0 %v582
        %604 = vmatprep.subr.mxu0 %v585
        %605 = vmatpush1.msra.mxu0 %v584
        %606 = vmatprep.subr.mxu0 %v587
        %607 = vmatpush1.msra.mxu0 %v586
        %608 = vmatprep.subr.mxu0 %v589
        %609 = vmatpush1.msra.mxu0 %v588
        %610 = vmatprep.subr.mxu0 %v591
        %611 = vmatpush1.msra.mxu0 %v590
        %612 = vmatprep.subr.mxu0 0.0
        %613 = vmatpush1.msra.mxu0 0.0
        %614 = vmatprep.subr.mxu0 0.0
        %615 = vmatpush1.msra.mxu0 0.0
        %616 = vmatprep.subr.mxu0 0.0
        %617 = vmatpush1.msra.mxu0 0.0
        %618 = vmatprep.subr.mxu0 0.0
        %619 = vmatpush1.msra.mxu0 0.0
        %620 = vmatprep.subr.mxu0 0.0
        %621 = vmatpush1.msra.mxu0 0.0
        %622 = vmatprep.subr.mxu0 0.0
        %623 = vmatpush1.msra.mxu0 0.0
        %624 = vmatprep.subr.mxu0 0.0
        %625 = vmatpush1.msra.mxu0 0.0
        %626 = vmatprep.subr.mxu0 0.0
        %627 = vmatpush1.msra.mxu0 0.0
        %628 = vmatprep.subr.mxu0 0.0
        %629 = vmatpush1.msra.mxu0 0.0
        %630 = vmatprep.subr.mxu0 0.0
        %631 = vmatpush1.msra.mxu0 0.0
        %632 = vmatprep.subr.mxu0 0.0
        %633 = vmatpush1.msra.mxu0 0.0
        %634 = vmatprep.subr.mxu0 0.0
        %635 = vmatpush1.msra.mxu0 0.0
        %636 = vmatprep.subr.mxu0 0.0
        %637 = vmatpush1.msra.mxu0 0.0
        %638 = vmatprep.subr.mxu0 0.0
        %639 = vmatpush1.msra.mxu0 0.0
        %640 = vmatprep.subr.mxu0 0.0
        %641 = vmatpush1.msra.mxu0 0.0
        %642 = vmatprep.subr.mxu0 0.0
        %643 = vmatpush1.msra.mxu0 0.0
        %644 = vmatprep.subr.mxu0 0.0
        %645 = vmatpush1.msra.mxu0 0.0
        %646 = vmatprep.subr.mxu0 0.0
        %647 = vmatpush1.msra.mxu0 0.0
        %648 = vmatprep.subr.mxu0 0.0
        %649 = vmatpush1.msra.mxu0 0.0
        %650 = vmatprep.subr.mxu0 0.0
        %651 = vmatpush1.msra.mxu0 0.0
        %652 = vmatprep.subr.mxu0 0.0
        %653 = vmatpush1.msra.mxu0 0.0
        %654 = vmatprep.subr.mxu0 0.0
        %655 = vmatpush1.msra.mxu0 0.0
        %656 = vmatprep.subr.mxu0 0.0
        %657 = vmatpush1.msra.mxu0 0.0
        %658 = vmatprep.subr.mxu0 0.0
        %659 = vmatpush1.msra.mxu0 0.0
        %660 = vmatprep.mubr.f32.mxu0 0.0
        %661 = vmatmul.mubr.f32.gmra.mrb[0].mxu0 %v594
        %v662 = vpop.f32.mrb[0].mxu0
        %v663 = vadd.f32 0.0, %v662
        %v664 = vpop.f32.mrb[0].mxu0
        %v665 = vadd.f32 0.0, %v664
        %666 = vdwg.mxu0
        %v668 = vsel %vm592, %v481, 0
        %670 = vmatprep.subr.mxu0 %v485
        %671 = vmatpush1.msra.mxu0 %v484
        %672 = vmatprep.subr.mxu0 %v487
        %673 = vmatpush1.msra.mxu0 %v486
        %674 = vmatprep.subr.mxu0 %v489
        %675 = vmatpush1.msra.mxu0 %v488
        %676 = vmatprep.subr.mxu0 %v491
        %677 = vmatpush1.msra.mxu0 %v490
        %678 = vmatprep.subr.mxu0 %v493
        %679 = vmatpush1.msra.mxu0 %v492
        %680 = vmatprep.subr.mxu0 %v495
        %681 = vmatpush1.msra.mxu0 %v494
        %682 = vmatprep.subr.mxu0 %v497
        %683 = vmatpush1.msra.mxu0 %v496
        %684 = vmatprep.subr.mxu0 %v499
        %685 = vmatpush1.msra.mxu0 %v498
        %686 = vmatprep.subr.mxu0 0.0
        %687 = vmatpush1.msra.mxu0 0.0
        %688 = vmatprep.subr.mxu0 0.0
        %689 = vmatpush1.msra.mxu0 0.0
        %690 = vmatprep.subr.mxu0 0.0
        %691 = vmatpush1.msra.mxu0 0.0
        %692 = vmatprep.subr.mxu0 0.0
        %693 = vmatpush1.msra.mxu0 0.0
        %694 = vmatprep.subr.mxu0 0.0
        %695 = vmatpush1.msra.mxu0 0.0
        %696 = vmatprep.subr.mxu0 0.0
        %697 = vmatpush1.msra.mxu0 0.0
        %698 = vmatprep.subr.mxu0 0.0
        %699 = vmatpush1.msra.mxu0 0.0
        %700 = vmatprep.subr.mxu0 0.0
        %701 = vmatpush1.msra.mxu0 0.0
        %702 = vmatprep.subr.mxu0 0.0
        %703 = vmatpush1.msra.mxu0 0.0
        %704 = vmatprep.subr.mxu0 0.0
        %705 = vmatpush1.msra.mxu0 0.0
        %706 = vmatprep.subr.mxu0 0.0
        %707 = vmatpush1.msra.mxu0 0.0
        %708 = vmatprep.subr.mxu0 0.0
        %709 = vmatpush1.msra.mxu0 0.0
        %710 = vmatprep.subr.mxu0 0.0
        %711 = vmatpush1.msra.mxu0 0.0
        %712 = vmatprep.subr.mxu0 0.0
        %713 = vmatpush1.msra.mxu0 0.0
        %714 = vmatprep.subr.mxu0 0.0
        %715 = vmatpush1.msra.mxu0 0.0
        %716 = vmatprep.subr.mxu0 0.0
        %717 = vmatpush1.msra.mxu0 0.0
        %718 = vmatprep.subr.mxu0 0.0
        %719 = vmatpush1.msra.mxu0 0.0
        %720 = vmatprep.subr.mxu0 0.0
        %721 = vmatpush1.msra.mxu0 0.0
        %722 = vmatprep.subr.mxu0 0.0
        %723 = vmatpush1.msra.mxu0 0.0
        %724 = vmatprep.subr.mxu0 0.0
        %725 = vmatpush1.msra.mxu0 0.0
        %726 = vmatprep.subr.mxu0 0.0
        %727 = vmatpush1.msra.mxu0 0.0
        %728 = vmatprep.subr.mxu0 0.0
        %729 = vmatpush1.msra.mxu0 0.0
        %730 = vmatprep.subr.mxu0 0.0
        %731 = vmatpush1.msra.mxu0 0.0
        %732 = vmatprep.subr.mxu0 0.0
        %733 = vmatpush1.msra.mxu0 0.0
        %734 = vmatprep.mubr.f32.mxu0 0.0
        %735 = vmatmul.mubr.f32.gmra.mrb[0].mxu0 %v668
        %v736 = vpop.f32.mrb[0].mxu0
        %v737 = vadd.f32 %v663, %v736
        %v738 = vpop.f32.mrb[0].mxu0
        %v739 = vadd.f32 %v665, %v738
        %740 = vdwg.mxu0
        %s741 = scalar_lea.vmem %s3, 8
        %v742 = vld [vmem:[%s741] sm:$0xf]
        %v744 = vsel %vm406, %v742, 0
        %746 = vmatprep.subr.mxu0 0.0
        %747 = vmatpush1.msra.mxu0 %v412
        %748 = vmatprep.subr.mxu0 0.0
        %749 = vmatpush1.msra.mxu0 0.0
        %750 = vmatprep.subr.mxu0 0.0
        %751 = vmatpush1.msra.mxu0 0.0
        %752 = vmatprep.subr.mxu0 0.0
        %753 = vmatpush1.msra.mxu0 0.0
        %754 = vmatprep.subr.mxu0 0.0
        %755 = vmatpush1.msra.mxu0 0.0
        %756 = vmatprep.subr.mxu0 0.0
        %757 = vmatpush1.msra.mxu0 0.0
        %758 = vmatprep.subr.mxu0 0.0
        %759 = vmatpush1.msra.mxu0 0.0
        %760 = vmatprep.subr.mxu0 0.0
        %761 = vmatpush1.msra.mxu0 0.0
        %762 = vmatprep.subr.mxu0 0.0
        %763 = vmatpush1.msra.mxu0 0.0
        %764 = vmatprep.subr.mxu0 0.0
        %765 = vmatpush1.msra.mxu0 0.0
        %766 = vmatprep.subr.mxu0 0.0
        %767 = vmatpush1.msra.mxu0 0.0
        %768 = vmatprep.subr.mxu0 0.0
        %769 = vmatpush1.msra.mxu0 0.0
        %770 = vmatprep.subr.mxu0 0.0
        %771 = vmatpush1.msra.mxu0 0.0
        %772 = vmatprep.subr.mxu0 0.0
        %773 = vmatpush1.msra.mxu0 0.0
        %774 = vmatprep.subr.mxu0 0.0
        %775 = vmatpush1.msra.mxu0 0.0
        %776 = vmatprep.subr.mxu0 0.0
        %777 = vmatpush1.msra.mxu0 0.0
        %778 = vmatprep.subr.mxu0 0.0
        %779 = vmatpush1.msra.mxu0 0.0
        %780 = vmatprep.subr.mxu0 0.0
        %781 = vmatpush1.msra.mxu0 0.0
        %782 = vmatprep.subr.mxu0 0.0
        %783 = vmatpush1.msra.mxu0 0.0
        %784 = vmatprep.subr.mxu0 0.0
        %785 = vmatpush1.msra.mxu0 0.0
        %786 = vmatprep.subr.mxu0 0.0
        %787 = vmatpush1.msra.mxu0 0.0
        %788 = vmatprep.subr.mxu0 0.0
        %789 = vmatpush1.msra.mxu0 0.0
        %790 = vmatprep.subr.mxu0 0.0
        %791 = vmatpush1.msra.mxu0 0.0
        %792 = vmatprep.subr.mxu0 0.0
        %793 = vmatpush1.msra.mxu0 0.0
        %794 = vmatprep.subr.mxu0 0.0
        %795 = vmatpush1.msra.mxu0 0.0
        %796 = vmatprep.subr.mxu0 0.0
        %797 = vmatpush1.msra.mxu0 0.0
        %798 = vmatprep.subr.mxu0 0.0
        %799 = vmatpush1.msra.mxu0 0.0
        %800 = vmatprep.subr.mxu0 0.0
        %801 = vmatpush1.msra.mxu0 0.0
        %802 = vmatprep.subr.mxu0 0.0
        %803 = vmatpush1.msra.mxu0 0.0
        %804 = vmatprep.subr.mxu0 0.0
        %805 = vmatpush1.msra.mxu0 0.0
        %806 = vmatprep.subr.mxu0 0.0
        %807 = vmatpush1.msra.mxu0 0.0
        %808 = vmatprep.subr.mxu0 0.0
        %809 = vmatpush1.msra.mxu0 0.0
        %810 = vmatprep.mubr.f32.mxu0 0.0
        %811 = vmatmul.mubr.f32.gmra.mrb[0].mxu0 %v744
        %v812 = vpop.f32.mrb[0].mxu0
        %v813 = vadd.f32 0.0, %v812
        %v814 = vpop.f32.mrb[0].mxu0
        %815 = vdwg.mxu0
        %s816 = scalar_lea.vmem [#allocation2], 256
        %v817 = vld [vmem:[%s816] sm:$0xff]
        %v818 = vld [vmem:[%s816 + $0x8] sm:$0xff]
        %v819 = vld [vmem:[%s816 + $0x10] sm:$0xff]
        %v820 = vld [vmem:[%s816 + $0x18] sm:$0xff]
        %v821 = vld [vmem:[%s816 + $0x20] sm:$0xff]
        %v822 = vld [vmem:[%s816 + $0x28] sm:$0xff]
        %v823 = vld [vmem:[%s816 + $0x30] sm:$0xff]
        %v824 = vld [vmem:[%s816 + $0x38] sm:$0xff]
        %v825 = vld [vmem:[%s816 + $0x40] sm:$0xff]
        %v826 = vld [vmem:[%s816 + $0x48] sm:$0xff]
        %v827 = vld [vmem:[%s816 + $0x50] sm:$0xff]
        %v828 = vld [vmem:[%s816 + $0x58] sm:$0xff]
        %v829 = vld [vmem:[%s816 + $0x60] sm:$0xff]
        %v830 = vld [vmem:[%s816 + $0x68] sm:$0xff]
        %v831 = vld [vmem:[%s816 + $0x70] sm:$0xff]
        %v832 = vld [vmem:[%s816 + $0x78] sm:$0xff]
        %v834 = vsel %vm592, %v813, 0
        %836 = vmatprep.subr.mxu0 %v818
        %837 = vmatpush1.msra.mxu0 %v817
        %838 = vmatprep.subr.mxu0 %v820
        %839 = vmatpush1.msra.mxu0 %v819
        %840 = vmatprep.subr.mxu0 %v822
        %841 = vmatpush1.msra.mxu0 %v821
        %842 = vmatprep.subr.mxu0 %v824
        %843 = vmatpush1.msra.mxu0 %v823
        %844 = vmatprep.subr.mxu0 %v826
        %845 = vmatpush1.msra.mxu0 %v825
        %846 = vmatprep.subr.mxu0 %v828
        %847 = vmatpush1.msra.mxu0 %v827
        %848 = vmatprep.subr.mxu0 %v830
        %849 = vmatpush1.msra.mxu0 %v829
        %850 = vmatprep.subr.mxu0 %v832
        %851 = vmatpush1.msra.mxu0 %v831
        %852 = vmatprep.subr.mxu0 0.0
        %853 = vmatpush1.msra.mxu0 0.0
        %854 = vmatprep.subr.mxu0 0.0
        %855 = vmatpush1.msra.mxu0 0.0
        %856 = vmatprep.subr.mxu0 0.0
        %857 = vmatpush1.msra.mxu0 0.0
        %858 = vmatprep.subr.mxu0 0.0
        %859 = vmatpush1.msra.mxu0 0.0
        %860 = vmatprep.subr.mxu0 0.0
        %861 = vmatpush1.msra.mxu0 0.0
        %862 = vmatprep.subr.mxu0 0.0
        %863 = vmatpush1.msra.mxu0 0.0
        %864 = vmatprep.subr.mxu0 0.0
        %865 = vmatpush1.msra.mxu0 0.0
        %866 = vmatprep.subr.mxu0 0.0
        %867 = vmatpush1.msra.mxu0 0.0
        %868 = vmatprep.subr.mxu0 0.0
        %869 = vmatpush1.msra.mxu0 0.0
        %870 = vmatprep.subr.mxu0 0.0
        %871 = vmatpush1.msra.mxu0 0.0
        %872 = vmatprep.subr.mxu0 0.0
        %873 = vmatpush1.msra.mxu0 0.0
        %874 = vmatprep.subr.mxu0 0.0
        %875 = vmatpush1.msra.mxu0 0.0
        %876 = vmatprep.subr.mxu0 0.0
        %877 = vmatpush1.msra.mxu0 0.0
        %878 = vmatprep.subr.mxu0 0.0
        %879 = vmatpush1.msra.mxu0 0.0
        %880 = vmatprep.subr.mxu0 0.0
        %881 = vmatpush1.msra.mxu0 0.0
        %882 = vmatprep.subr.mxu0 0.0
        %883 = vmatpush1.msra.mxu0 0.0
        %884 = vmatprep.subr.mxu0 0.0
        %885 = vmatpush1.msra.mxu0 0.0
        %886 = vmatprep.subr.mxu0 0.0
        %887 = vmatpush1.msra.mxu0 0.0
        %888 = vmatprep.subr.mxu0 0.0
        %889 = vmatpush1.msra.mxu0 0.0
        %890 = vmatprep.subr.mxu0 0.0
        %891 = vmatpush1.msra.mxu0 0.0
        %892 = vmatprep.subr.mxu0 0.0
        %893 = vmatpush1.msra.mxu0 0.0
        %894 = vmatprep.subr.mxu0 0.0
        %895 = vmatpush1.msra.mxu0 0.0
        %896 = vmatprep.subr.mxu0 0.0
        %897 = vmatpush1.msra.mxu0 0.0
        %898 = vmatprep.subr.mxu0 0.0
        %899 = vmatpush1.msra.mxu0 0.0
        %900 = vmatprep.mubr.f32.mxu0 0.0
        %901 = vmatmul.mubr.f32.gmra.mrb[0].mxu0 %v834
        %v902 = vpop.f32.mrb[0].mxu0
        %v903 = vadd.f32 0.0, %v902
        %v904 = vpop.f32.mrb[0].mxu0
        %v905 = vadd.f32 0.0, %v904
        %906 = vdwg.mxu0
        %v907 = vadd.f32 %v737, %v903
        %v908 = vadd.f32 %v739, %v905
        %s909 = scalar_lea.vmem %s3, 12
        %v910 = vld [vmem:[%s909] sm:$0xf]
        %v912 = vsel %vm406, %v910, 0
        %914 = vmatprep.subr.mxu0 0.0
        %915 = vmatpush1.msra.mxu0 %v412
        %916 = vmatprep.subr.mxu0 0.0
        %917 = vmatpush1.msra.mxu0 0.0
        %918 = vmatprep.subr.mxu0 0.0
        %919 = vmatpush1.msra.mxu0 0.0
        %920 = vmatprep.subr.mxu0 0.0
        %921 = vmatpush1.msra.mxu0 0.0
        %922 = vmatprep.subr.mxu0 0.0
        %923 = vmatpush1.msra.mxu0 0.0
        %924 = vmatprep.subr.mxu0 0.0
        %925 = vmatpush1.msra.mxu0 0.0
        %926 = vmatprep.subr.mxu0 0.0
        %927 = vmatpush1.msra.mxu0 0.0
        %928 = vmatprep.subr.mxu0 0.0
        %929 = vmatpush1.msra.mxu0 0.0
        %930 = vmatprep.subr.mxu0 0.0
        %931 = vmatpush1.msra.mxu0 0.0
        %932 = vmatprep.subr.mxu0 0.0
        %933 = vmatpush1.msra.mxu0 0.0
        %934 = vmatprep.subr.mxu0 0.0
        %935 = vmatpush1.msra.mxu0 0.0
        %936 = vmatprep.subr.mxu0 0.0
        %937 = vmatpush1.msra.mxu0 0.0
        %938 = vmatprep.subr.mxu0 0.0
        %939 = vmatpush1.msra.mxu0 0.0
        %940 = vmatprep.subr.mxu0 0.0
        %941 = vmatpush1.msra.mxu0 0.0
        %942 = vmatprep.subr.mxu0 0.0
        %943 = vmatpush1.msra.mxu0 0.0
        %944 = vmatprep.subr.mxu0 0.0
        %945 = vmatpush1.msra.mxu0 0.0
        %946 = vmatprep.subr.mxu0 0.0
        %947 = vmatpush1.msra.mxu0 0.0
        %948 = vmatprep.subr.mxu0 0.0
        %949 = vmatpush1.msra.mxu0 0.0
        %950 = vmatprep.subr.mxu0 0.0
        %951 = vmatpush1.msra.mxu0 0.0
        %952 = vmatprep.subr.mxu0 0.0
        %953 = vmatpush1.msra.mxu0 0.0
        %954 = vmatprep.subr.mxu0 0.0
        %955 = vmatpush1.msra.mxu0 0.0
        %956 = vmatprep.subr.mxu0 0.0
        %957 = vmatpush1.msra.mxu0 0.0
        %958 = vmatprep.subr.mxu0 0.0
        %959 = vmatpush1.msra.mxu0 0.0
        %960 = vmatprep.subr.mxu0 0.0
        %961 = vmatpush1.msra.mxu0 0.0
        %962 = vmatprep.subr.mxu0 0.0
        %963 = vmatpush1.msra.mxu0 0.0
        %964 = vmatprep.subr.mxu0 0.0
        %965 = vmatpush1.msra.mxu0 0.0
        %966 = vmatprep.subr.mxu0 0.0
        %967 = vmatpush1.msra.mxu0 0.0
        %968 = vmatprep.subr.mxu0 0.0
        %969 = vmatpush1.msra.mxu0 0.0
        %970 = vmatprep.subr.mxu0 0.0
        %971 = vmatpush1.msra.mxu0 0.0
        %972 = vmatprep.subr.mxu0 0.0
        %973 = vmatpush1.msra.mxu0 0.0
        %974 = vmatprep.subr.mxu0 0.0
        %975 = vmatpush1.msra.mxu0 0.0
        %976 = vmatprep.subr.mxu0 0.0
        %977 = vmatpush1.msra.mxu0 0.0
        %978 = vmatprep.mubr.f32.mxu0 0.0
        %979 = vmatmul.mubr.f32.gmra.mrb[0].mxu0 %v912
        %v980 = vpop.f32.mrb[0].mxu0
        %v981 = vadd.f32 0.0, %v980
        %v982 = vpop.f32.mrb[0].mxu0
        %983 = vdwg.mxu0
        %s984 = scalar_lea.vmem [#allocation2], 384
        %v985 = vld [vmem:[%s984] sm:$0xff]
        %v986 = vld [vmem:[%s984 + $0x8] sm:$0xff]
        %v987 = vld [vmem:[%s984 + $0x10] sm:$0xff]
        %v988 = vld [vmem:[%s984 + $0x18] sm:$0xff]
        %v989 = vld [vmem:[%s984 + $0x20] sm:$0xff]
        %v990 = vld [vmem:[%s984 + $0x28] sm:$0xff]
        %v991 = vld [vmem:[%s984 + $0x30] sm:$0xff]
        %v992 = vld [vmem:[%s984 + $0x38] sm:$0xff]
        %v993 = vld [vmem:[%s984 + $0x40] sm:$0xff]
        %v994 = vld [vmem:[%s984 + $0x48] sm:$0xff]
        %v995 = vld [vmem:[%s984 + $0x50] sm:$0xff]
        %v996 = vld [vmem:[%s984 + $0x58] sm:$0xff]
        %v997 = vld [vmem:[%s984 + $0x60] sm:$0xff]
        %v998 = vld [vmem:[%s984 + $0x68] sm:$0xff]
        %v999 = vld [vmem:[%s984 + $0x70] sm:$0xff]
        %v1000 = vld [vmem:[%s984 + $0x78] sm:$0xff]
        %v1002 = vsel %vm592, %v981, 0
        %1004 = vmatprep.subr.mxu0 %v986
        %1005 = vmatpush1.msra.mxu0 %v985
        %1006 = vmatprep.subr.mxu0 %v988
        %1007 = vmatpush1.msra.mxu0 %v987
        %1008 = vmatprep.subr.mxu0 %v990
        %1009 = vmatpush1.msra.mxu0 %v989
        %1010 = vmatprep.subr.mxu0 %v992
        %1011 = vmatpush1.msra.mxu0 %v991
        %1012 = vmatprep.subr.mxu0 %v994
        %1013 = vmatpush1.msra.mxu0 %v993
        %1014 = vmatprep.subr.mxu0 %v996
        %1015 = vmatpush1.msra.mxu0 %v995
        %1016 = vmatprep.subr.mxu0 %v998
        %1017 = vmatpush1.msra.mxu0 %v997
        %1018 = vmatprep.subr.mxu0 %v1000
        %1019 = vmatpush1.msra.mxu0 %v999
        %1020 = vmatprep.subr.mxu0 0.0
        %1021 = vmatpush1.msra.mxu0 0.0
        %1022 = vmatprep.subr.mxu0 0.0
        %1023 = vmatpush1.msra.mxu0 0.0
        %1024 = vmatprep.subr.mxu0 0.0
        %1025 = vmatpush1.msra.mxu0 0.0
        %1026 = vmatprep.subr.mxu0 0.0
        %1027 = vmatpush1.msra.mxu0 0.0
        %1028 = vmatprep.subr.mxu0 0.0
        %1029 = vmatpush1.msra.mxu0 0.0
        %1030 = vmatprep.subr.mxu0 0.0
        %1031 = vmatpush1.msra.mxu0 0.0
        %1032 = vmatprep.subr.mxu0 0.0
        %1033 = vmatpush1.msra.mxu0 0.0
        %1034 = vmatprep.subr.mxu0 0.0
        %1035 = vmatpush1.msra.mxu0 0.0
        %1036 = vmatprep.subr.mxu0 0.0
        %1037 = vmatpush1.msra.mxu0 0.0
        %1038 = vmatprep.subr.mxu0 0.0
        %1039 = vmatpush1.msra.mxu0 0.0
        %1040 = vmatprep.subr.mxu0 0.0
        %1041 = vmatpush1.msra.mxu0 0.0
        %1042 = vmatprep.subr.mxu0 0.0
        %1043 = vmatpush1.msra.mxu0 0.0
        %1044 = vmatprep.subr.mxu0 0.0
        %1045 = vmatpush1.msra.mxu0 0.0
        %1046 = vmatprep.subr.mxu0 0.0
        %1047 = vmatpush1.msra.mxu0 0.0
        %1048 = vmatprep.subr.mxu0 0.0
        %1049 = vmatpush1.msra.mxu0 0.0
        %1050 = vmatprep.subr.mxu0 0.0
        %1051 = vmatpush1.msra.mxu0 0.0
        %1052 = vmatprep.subr.mxu0 0.0
        %1053 = vmatpush1.msra.mxu0 0.0
        %1054 = vmatprep.subr.mxu0 0.0
        %1055 = vmatpush1.msra.mxu0 0.0
        %1056 = vmatprep.subr.mxu0 0.0
        %1057 = vmatpush1.msra.mxu0 0.0
        %1058 = vmatprep.subr.mxu0 0.0
        %1059 = vmatpush1.msra.mxu0 0.0
        %1060 = vmatprep.subr.mxu0 0.0
        %1061 = vmatpush1.msra.mxu0 0.0
        %1062 = vmatprep.subr.mxu0 0.0
        %1063 = vmatpush1.msra.mxu0 0.0
        %1064 = vmatprep.subr.mxu0 0.0
        %1065 = vmatpush1.msra.mxu0 0.0
        %1066 = vmatprep.subr.mxu0 0.0
        %1067 = vmatpush1.msra.mxu0 0.0
        %1068 = vmatprep.mubr.f32.mxu0 0.0
        %1069 = vmatmul.mubr.f32.gmra.mrb[0].mxu0 %v1002
        %v1070 = vpop.f32.mrb[0].mxu0
        %v1071 = vadd.f32 0.0, %v1070
        %v1072 = vpop.f32.mrb[0].mxu0
        %v1073 = vadd.f32 0.0, %v1072
        %1074 = vdwg.mxu0
        %v1075 = vadd.f32 %v907, %v1071
        %v1076 = vadd.f32 %v908, %v1073
        %s1077 = scalar_lea.vmem %s3, 16
        %v1078 = vld [vmem:[%s1077] sm:$0xf]
        %v1080 = vsel %vm406, %v1078, 0
        %1082 = vmatprep.subr.mxu0 0.0
        %1083 = vmatpush1.msra.mxu0 %v412
        %1084 = vmatprep.subr.mxu0 0.0
        %1085 = vmatpush1.msra.mxu0 0.0
        %1086 = vmatprep.subr.mxu0 0.0
        %1087 = vmatpush1.msra.mxu0 0.0
        %1088 = vmatprep.subr.mxu0 0.0
        %1089 = vmatpush1.msra.mxu0 0.0
        %1090 = vmatprep.subr.mxu0 0.0
        %1091 = vmatpush1.msra.mxu0 0.0
        %1092 = vmatprep.subr.mxu0 0.0
        %1093 = vmatpush1.msra.mxu0 0.0
        %1094 = vmatprep.subr.mxu0 0.0
        %1095 = vmatpush1.msra.mxu0 0.0
        %1096 = vmatprep.subr.mxu0 0.0
        %1097 = vmatpush1.msra.mxu0 0.0
        %1098 = vmatprep.subr.mxu0 0.0
        %1099 = vmatpush1.msra.mxu0 0.0
        %1100 = vmatprep.subr.mxu0 0.0
        %1101 = vmatpush1.msra.mxu0 0.0
        %1102 = vmatprep.subr.mxu0 0.0
        %1103 = vmatpush1.msra.mxu0 0.0
        %1104 = vmatprep.subr.mxu0 0.0
        %1105 = vmatpush1.msra.mxu0 0.0
        %1106 = vmatprep.subr.mxu0 0.0
        %1107 = vmatpush1.msra.mxu0 0.0
        %1108 = vmatprep.subr.mxu0 0.0
        %1109 = vmatpush1.msra.mxu0 0.0
        %1110 = vmatprep.subr.mxu0 0.0
        %1111 = vmatpush1.msra.mxu0 0.0
        %1112 = vmatprep.subr.mxu0 0.0
        %1113 = vmatpush1.msra.mxu0 0.0
        %1114 = vmatprep.subr.mxu0 0.0
        %1115 = vmatpush1.msra.mxu0 0.0
        %1116 = vmatprep.subr.mxu0 0.0
        %1117 = vmatpush1.msra.mxu0 0.0
        %1118 = vmatprep.subr.mxu0 0.0
        %1119 = vmatpush1.msra.mxu0 0.0
        %1120 = vmatprep.subr.mxu0 0.0
        %1121 = vmatpush1.msra.mxu0 0.0
        %1122 = vmatprep.subr.mxu0 0.0
        %1123 = vmatpush1.msra.mxu0 0.0
        %1124 = vmatprep.subr.mxu0 0.0
        %1125 = vmatpush1.msra.mxu0 0.0
        %1126 = vmatprep.subr.mxu0 0.0
        %1127 = vmatpush1.msra.mxu0 0.0
        %1128 = vmatprep.subr.mxu0 0.0
        %1129 = vmatpush1.msra.mxu0 0.0
        %1130 = vmatprep.subr.mxu0 0.0
        %1131 = vmatpush1.msra.mxu0 0.0
        %1132 = vmatprep.subr.mxu0 0.0
        %1133 = vmatpush1.msra.mxu0 0.0
        %1134 = vmatprep.subr.mxu0 0.0
        %1135 = vmatpush1.msra.mxu0 0.0
        %1136 = vmatprep.subr.mxu0 0.0
        %1137 = vmatpush1.msra.mxu0 0.0
        %1138 = vmatprep.subr.mxu0 0.0
        %1139 = vmatpush1.msra.mxu0 0.0
        %1140 = vmatprep.subr.mxu0 0.0
        %1141 = vmatpush1.msra.mxu0 0.0
        %1142 = vmatprep.subr.mxu0 0.0
        %1143 = vmatpush1.msra.mxu0 0.0
        %1144 = vmatprep.subr.mxu0 0.0
        %1145 = vmatpush1.msra.mxu0 0.0
        %1146 = vmatprep.mubr.f32.mxu0 0.0
        %1147 = vmatmul.mubr.f32.gmra.mrb[0].mxu0 %v1080
        %v1148 = vpop.f32.mrb[0].mxu0
        %v1149 = vadd.f32 0.0, %v1148
        %v1150 = vpop.f32.mrb[0].mxu0
        %1151 = vdwg.mxu0
        %s1152 = scalar_lea.vmem [#allocation2], 512
        %v1153 = vld [vmem:[%s1152] sm:$0xff]
        %v1154 = vld [vmem:[%s1152 + $0x8] sm:$0xff]
        %v1155 = vld [vmem:[%s1152 + $0x10] sm:$0xff]
        %v1156 = vld [vmem:[%s1152 + $0x18] sm:$0xff]
        %v1157 = vld [vmem:[%s1152 + $0x20] sm:$0xff]
        %v1158 = vld [vmem:[%s1152 + $0x28] sm:$0xff]
        %v1159 = vld [vmem:[%s1152 + $0x30] sm:$0xff]
        %v1160 = vld [vmem:[%s1152 + $0x38] sm:$0xff]
        %v1161 = vld [vmem:[%s1152 + $0x40] sm:$0xff]
        %v1162 = vld [vmem:[%s1152 + $0x48] sm:$0xff]
        %v1163 = vld [vmem:[%s1152 + $0x50] sm:$0xff]
        %v1164 = vld [vmem:[%s1152 + $0x58] sm:$0xff]
        %v1165 = vld [vmem:[%s1152 + $0x60] sm:$0xff]
        %v1166 = vld [vmem:[%s1152 + $0x68] sm:$0xff]
        %v1167 = vld [vmem:[%s1152 + $0x70] sm:$0xff]
        %v1168 = vld [vmem:[%s1152 + $0x78] sm:$0xff]
        %v1170 = vsel %vm592, %v1149, 0
        %1172 = vmatprep.subr.mxu0 %v1154
        %1173 = vmatpush1.msra.mxu0 %v1153
        %1174 = vmatprep.subr.mxu0 %v1156
        %1175 = vmatpush1.msra.mxu0 %v1155
        %1176 = vmatprep.subr.mxu0 %v1158
        %1177 = vmatpush1.msra.mxu0 %v1157
        %1178 = vmatprep.subr.mxu0 %v1160
        %1179 = vmatpush1.msra.mxu0 %v1159
        %1180 = vmatprep.subr.mxu0 %v1162
        %1181 = vmatpush1.msra.mxu0 %v1161
        %1182 = vmatprep.subr.mxu0 %v1164
        %1183 = vmatpush1.msra.mxu0 %v1163
        %1184 = vmatprep.subr.mxu0 %v1166
        %1185 = vmatpush1.msra.mxu0 %v1165
        %1186 = vmatprep.subr.mxu0 %v1168
        %1187 = vmatpush1.msra.mxu0 %v1167
        %1188 = vmatprep.subr.mxu0 0.0
        %1189 = vmatpush1.msra.mxu0 0.0
        %1190 = vmatprep.subr.mxu0 0.0
        %1191 = vmatpush1.msra.mxu0 0.0
        %1192 = vmatprep.subr.mxu0 0.0
        %1193 = vmatpush1.msra.mxu0 0.0
        %1194 = vmatprep.subr.mxu0 0.0
        %1195 = vmatpush1.msra.mxu0 0.0
        %1196 = vmatprep.subr.mxu0 0.0
        %1197 = vmatpush1.msra.mxu0 0.0
        %1198 = vmatprep.subr.mxu0 0.0
        %1199 = vmatpush1.msra.mxu0 0.0
        %1200 = vmatprep.subr.mxu0 0.0
        %1201 = vmatpush1.msra.mxu0 0.0
        %1202 = vmatprep.subr.mxu0 0.0
        %1203 = vmatpush1.msra.mxu0 0.0
        %1204 = vmatprep.subr.mxu0 0.0
        %1205 = vmatpush1.msra.mxu0 0.0
        %1206 = vmatprep.subr.mxu0 0.0
        %1207 = vmatpush1.msra.mxu0 0.0
        %1208 = vmatprep.subr.mxu0 0.0
        %1209 = vmatpush1.msra.mxu0 0.0
        %1210 = vmatprep.subr.mxu0 0.0
        %1211 = vmatpush1.msra.mxu0 0.0
        %1212 = vmatprep.subr.mxu0 0.0
        %1213 = vmatpush1.msra.mxu0 0.0
        %1214 = vmatprep.subr.mxu0 0.0
        %1215 = vmatpush1.msra.mxu0 0.0
        %1216 = vmatprep.subr.mxu0 0.0
        %1217 = vmatpush1.msra.mxu0 0.0
        %1218 = vmatprep.subr.mxu0 0.0
        %1219 = vmatpush1.msra.mxu0 0.0
        %1220 = vmatprep.subr.mxu0 0.0
        %1221 = vmatpush1.msra.mxu0 0.0
        %1222 = vmatprep.subr.mxu0 0.0
        %1223 = vmatpush1.msra.mxu0 0.0
        %1224 = vmatprep.subr.mxu0 0.0
        %1225 = vmatpush1.msra.mxu0 0.0
        %1226 = vmatprep.subr.mxu0 0.0
        %1227 = vmatpush1.msra.mxu0 0.0
        %1228 = vmatprep.subr.mxu0 0.0
        %1229 = vmatpush1.msra.mxu0 0.0
        %1230 = vmatprep.subr.mxu0 0.0
        %1231 = vmatpush1.msra.mxu0 0.0
        %1232 = vmatprep.subr.mxu0 0.0
        %1233 = vmatpush1.msra.mxu0 0.0
        %1234 = vmatprep.subr.mxu0 0.0
        %1235 = vmatpush1.msra.mxu0 0.0
        %1236 = vmatprep.mubr.f32.mxu0 0.0
        %1237 = vmatmul.mubr.f32.gmra.mrb[0].mxu0 %v1170
        %v1238 = vpop.f32.mrb[0].mxu0
        %v1239 = vadd.f32 0.0, %v1238
        %v1240 = vpop.f32.mrb[0].mxu0
        %v1241 = vadd.f32 0.0, %v1240
        %1242 = vdwg.mxu0
        %v1243 = vadd.f32 %v1075, %v1239
        %v1244 = vadd.f32 %v1076, %v1241
        %s1245 = scalar_lea.vmem %s3, 20
        %v1246 = vld [vmem:[%s1245] sm:$0xf]
        %v1248 = vsel %vm406, %v1246, 0
        %1250 = vmatprep.subr.mxu0 0.0
        %1251 = vmatpush1.msra.mxu0 %v412
        %1252 = vmatprep.subr.mxu0 0.0
        %1253 = vmatpush1.msra.mxu0 0.0
        %1254 = vmatprep.subr.mxu0 0.0
        %1255 = vmatpush1.msra.mxu0 0.0
        %1256 = vmatprep.subr.mxu0 0.0
        %1257 = vmatpush1.msra.mxu0 0.0
        %1258 = vmatprep.subr.mxu0 0.0
        %1259 = vmatpush1.msra.mxu0 0.0
        %1260 = vmatprep.subr.mxu0 0.0
        %1261 = vmatpush1.msra.mxu0 0.0
        %1262 = vmatprep.subr.mxu0 0.0
        %1263 = vmatpush1.msra.mxu0 0.0
        %1264 = vmatprep.subr.mxu0 0.0
        %1265 = vmatpush1.msra.mxu0 0.0
        %1266 = vmatprep.subr.mxu0 0.0
        %1267 = vmatpush1.msra.mxu0 0.0
        %1268 = vmatprep.subr.mxu0 0.0
        %1269 = vmatpush1.msra.mxu0 0.0
        %1270 = vmatprep.subr.mxu0 0.0
        %1271 = vmatpush1.msra.mxu0 0.0
        %1272 = vmatprep.subr.mxu0 0.0
        %1273 = vmatpush1.msra.mxu0 0.0
        %1274 = vmatprep.subr.mxu0 0.0
        %1275 = vmatpush1.msra.mxu0 0.0
        %1276 = vmatprep.subr.mxu0 0.0
        %1277 = vmatpush1.msra.mxu0 0.0
        %1278 = vmatprep.subr.mxu0 0.0
        %1279 = vmatpush1.msra.mxu0 0.0
        %1280 = vmatprep.subr.mxu0 0.0
        %1281 = vmatpush1.msra.mxu0 0.0
        %1282 = vmatprep.subr.mxu0 0.0
        %1283 = vmatpush1.msra.mxu0 0.0
        %1284 = vmatprep.subr.mxu0 0.0
        %1285 = vmatpush1.msra.mxu0 0.0
        %1286 = vmatprep.subr.mxu0 0.0
        %1287 = vmatpush1.msra.mxu0 0.0
        %1288 = vmatprep.subr.mxu0 0.0
        %1289 = vmatpush1.msra.mxu0 0.0
        %1290 = vmatprep.subr.mxu0 0.0
        %1291 = vmatpush1.msra.mxu0 0.0
        %1292 = vmatprep.subr.mxu0 0.0
        %1293 = vmatpush1.msra.mxu0 0.0
        %1294 = vmatprep.subr.mxu0 0.0
        %1295 = vmatpush1.msra.mxu0 0.0
        %1296 = vmatprep.subr.mxu0 0.0
        %1297 = vmatpush1.msra.mxu0 0.0
        %1298 = vmatprep.subr.mxu0 0.0
        %1299 = vmatpush1.msra.mxu0 0.0
        %1300 = vmatprep.subr.mxu0 0.0
        %1301 = vmatpush1.msra.mxu0 0.0
        %1302 = vmatprep.subr.mxu0 0.0
        %1303 = vmatpush1.msra.mxu0 0.0
        %1304 = vmatprep.subr.mxu0 0.0
        %1305 = vmatpush1.msra.mxu0 0.0
        %1306 = vmatprep.subr.mxu0 0.0
        %1307 = vmatpush1.msra.mxu0 0.0
        %1308 = vmatprep.subr.mxu0 0.0
        %1309 = vmatpush1.msra.mxu0 0.0
        %1310 = vmatprep.subr.mxu0 0.0
        %1311 = vmatpush1.msra.mxu0 0.0
        %1312 = vmatprep.subr.mxu0 0.0
        %1313 = vmatpush1.msra.mxu0 0.0
        %1314 = vmatprep.mubr.f32.mxu0 0.0
        %1315 = vmatmul.mubr.f32.gmra.mrb[0].mxu0 %v1248
        %v1316 = vpop.f32.mrb[0].mxu0
        %v1317 = vadd.f32 0.0, %v1316
        %v1318 = vpop.f32.mrb[0].mxu0
        %1319 = vdwg.mxu0
        %s1320 = scalar_lea.vmem [#allocation2], 640
        %v1321 = vld [vmem:[%s1320] sm:$0xff]
        %v1322 = vld [vmem:[%s1320 + $0x8] sm:$0xff]
        %v1323 = vld [vmem:[%s1320 + $0x10] sm:$0xff]
        %v1324 = vld [vmem:[%s1320 + $0x18] sm:$0xff]
        %v1325 = vld [vmem:[%s1320 + $0x20] sm:$0xff]
        %v1326 = vld [vmem:[%s1320 + $0x28] sm:$0xff]
        %v1327 = vld [vmem:[%s1320 + $0x30] sm:$0xff]
        %v1328 = vld [vmem:[%s1320 + $0x38] sm:$0xff]
        %v1329 = vld [vmem:[%s1320 + $0x40] sm:$0xff]
        %v1330 = vld [vmem:[%s1320 + $0x48] sm:$0xff]
        %v1331 = vld [vmem:[%s1320 + $0x50] sm:$0xff]
        %v1332 = vld [vmem:[%s1320 + $0x58] sm:$0xff]
        %v1333 = vld [vmem:[%s1320 + $0x60] sm:$0xff]
        %v1334 = vld [vmem:[%s1320 + $0x68] sm:$0xff]
        %v1335 = vld [vmem:[%s1320 + $0x70] sm:$0xff]
        %v1336 = vld [vmem:[%s1320 + $0x78] sm:$0xff]
        %v1338 = vsel %vm592, %v1317, 0
        %1340 = vmatprep.subr.mxu0 %v1322
        %1341 = vmatpush1.msra.mxu0 %v1321
        %1342 = vmatprep.subr.mxu0 %v1324
        %1343 = vmatpush1.msra.mxu0 %v1323
        %1344 = vmatprep.subr.mxu0 %v1326
        %1345 = vmatpush1.msra.mxu0 %v1325
        %1346 = vmatprep.subr.mxu0 %v1328
        %1347 = vmatpush1.msra.mxu0 %v1327
        %1348 = vmatprep.subr.mxu0 %v1330
        %1349 = vmatpush1.msra.mxu0 %v1329
        %1350 = vmatprep.subr.mxu0 %v1332
        %1351 = vmatpush1.msra.mxu0 %v1331
        %1352 = vmatprep.subr.mxu0 %v1334
        %1353 = vmatpush1.msra.mxu0 %v1333
        %1354 = vmatprep.subr.mxu0 %v1336
        %1355 = vmatpush1.msra.mxu0 %v1335
        %1356 = vmatprep.subr.mxu0 0.0
        %1357 = vmatpush1.msra.mxu0 0.0
        %1358 = vmatprep.subr.mxu0 0.0
        %1359 = vmatpush1.msra.mxu0 0.0
        %1360 = vmatprep.subr.mxu0 0.0
        %1361 = vmatpush1.msra.mxu0 0.0
        %1362 = vmatprep.subr.mxu0 0.0
        %1363 = vmatpush1.msra.mxu0 0.0
        %1364 = vmatprep.subr.mxu0 0.0
        %1365 = vmatpush1.msra.mxu0 0.0
        %1366 = vmatprep.subr.mxu0 0.0
        %1367 = vmatpush1.msra.mxu0 0.0
        %1368 = vmatprep.subr.mxu0 0.0
        %1369 = vmatpush1.msra.mxu0 0.0
        %1370 = vmatprep.subr.mxu0 0.0
        %1371 = vmatpush1.msra.mxu0 0.0
        %1372 = vmatprep.subr.mxu0 0.0
        %1373 = vmatpush1.msra.mxu0 0.0
        %1374 = vmatprep.subr.mxu0 0.0
        %1375 = vmatpush1.msra.mxu0 0.0
        %1376 = vmatprep.subr.mxu0 0.0
        %1377 = vmatpush1.msra.mxu0 0.0
        %1378 = vmatprep.subr.mxu0 0.0
        %1379 = vmatpush1.msra.mxu0 0.0
        %1380 = vmatprep.subr.mxu0 0.0
        %1381 = vmatpush1.msra.mxu0 0.0
        %1382 = vmatprep.subr.mxu0 0.0
        %1383 = vmatpush1.msra.mxu0 0.0
        %1384 = vmatprep.subr.mxu0 0.0
        %1385 = vmatpush1.msra.mxu0 0.0
        %1386 = vmatprep.subr.mxu0 0.0
        %1387 = vmatpush1.msra.mxu0 0.0
        %1388 = vmatprep.subr.mxu0 0.0
        %1389 = vmatpush1.msra.mxu0 0.0
        %1390 = vmatprep.subr.mxu0 0.0
        %1391 = vmatpush1.msra.mxu0 0.0
        %1392 = vmatprep.subr.mxu0 0.0
        %1393 = vmatpush1.msra.mxu0 0.0
        %1394 = vmatprep.subr.mxu0 0.0
        %1395 = vmatpush1.msra.mxu0 0.0
        %1396 = vmatprep.subr.mxu0 0.0
        %1397 = vmatpush1.msra.mxu0 0.0
        %1398 = vmatprep.subr.mxu0 0.0
        %1399 = vmatpush1.msra.mxu0 0.0
        %1400 = vmatprep.subr.mxu0 0.0
        %1401 = vmatpush1.msra.mxu0 0.0
        %1402 = vmatprep.subr.mxu0 0.0
        %1403 = vmatpush1.msra.mxu0 0.0
        %1404 = vmatprep.mubr.f32.mxu0 0.0
        %1405 = vmatmul.mubr.f32.gmra.mrb[0].mxu0 %v1338
        %v1406 = vpop.f32.mrb[0].mxu0
        %v1407 = vadd.f32 0.0, %v1406
        %v1408 = vpop.f32.mrb[0].mxu0
        %v1409 = vadd.f32 0.0, %v1408
        %1410 = vdwg.mxu0
        %v1411 = vadd.f32 %v1243, %v1407
        %v1412 = vadd.f32 %v1244, %v1409
        %s1413 = scalar_lea.vmem %s3, 24
        %v1414 = vld [vmem:[%s1413] sm:$0xf]
        %v1416 = vsel %vm406, %v1414, 0
        %1418 = vmatprep.subr.mxu0 0.0
        %1419 = vmatpush1.msra.mxu0 %v412
        %1420 = vmatprep.subr.mxu0 0.0
        %1421 = vmatpush1.msra.mxu0 0.0
        %1422 = vmatprep.subr.mxu0 0.0
        %1423 = vmatpush1.msra.mxu0 0.0
        %1424 = vmatprep.subr.mxu0 0.0
        %1425 = vmatpush1.msra.mxu0 0.0
        %1426 = vmatprep.subr.mxu0 0.0
        %1427 = vmatpush1.msra.mxu0 0.0
        %1428 = vmatprep.subr.mxu0 0.0
        %1429 = vmatpush1.msra.mxu0 0.0
        %1430 = vmatprep.subr.mxu0 0.0
        %1431 = vmatpush1.msra.mxu0 0.0
        %1432 = vmatprep.subr.mxu0 0.0
        %1433 = vmatpush1.msra.mxu0 0.0
        %1434 = vmatprep.subr.mxu0 0.0
        %1435 = vmatpush1.msra.mxu0 0.0
        %1436 = vmatprep.subr.mxu0 0.0
        %1437 = vmatpush1.msra.mxu0 0.0
        %1438 = vmatprep.subr.mxu0 0.0
        %1439 = vmatpush1.msra.mxu0 0.0
        %1440 = vmatprep.subr.mxu0 0.0
        %1441 = vmatpush1.msra.mxu0 0.0
        %1442 = vmatprep.subr.mxu0 0.0
        %1443 = vmatpush1.msra.mxu0 0.0
        %1444 = vmatprep.subr.mxu0 0.0
        %1445 = vmatpush1.msra.mxu0 0.0
        %1446 = vmatprep.subr.mxu0 0.0
        %1447 = vmatpush1.msra.mxu0 0.0
        %1448 = vmatprep.subr.mxu0 0.0
        %1449 = vmatpush1.msra.mxu0 0.0
        %1450 = vmatprep.subr.mxu0 0.0
        %1451 = vmatpush1.msra.mxu0 0.0
        %1452 = vmatprep.subr.mxu0 0.0
        %1453 = vmatpush1.msra.mxu0 0.0
        %1454 = vmatprep.subr.mxu0 0.0
        %1455 = vmatpush1.msra.mxu0 0.0
        %1456 = vmatprep.subr.mxu0 0.0
        %1457 = vmatpush1.msra.mxu0 0.0
        %1458 = vmatprep.subr.mxu0 0.0
        %1459 = vmatpush1.msra.mxu0 0.0
        %1460 = vmatprep.subr.mxu0 0.0
        %1461 = vmatpush1.msra.mxu0 0.0
        %1462 = vmatprep.subr.mxu0 0.0
        %1463 = vmatpush1.msra.mxu0 0.0
        %1464 = vmatprep.subr.mxu0 0.0
        %1465 = vmatpush1.msra.mxu0 0.0
        %1466 = vmatprep.subr.mxu0 0.0
        %1467 = vmatpush1.msra.mxu0 0.0
        %1468 = vmatprep.subr.mxu0 0.0
        %1469 = vmatpush1.msra.mxu0 0.0
        %1470 = vmatprep.subr.mxu0 0.0
        %1471 = vmatpush1.msra.mxu0 0.0
        %1472 = vmatprep.subr.mxu0 0.0
        %1473 = vmatpush1.msra.mxu0 0.0
        %1474 = vmatprep.subr.mxu0 0.0
        %1475 = vmatpush1.msra.mxu0 0.0
        %1476 = vmatprep.subr.mxu0 0.0
        %1477 = vmatpush1.msra.mxu0 0.0
        %1478 = vmatprep.subr.mxu0 0.0
        %1479 = vmatpush1.msra.mxu0 0.0
        %1480 = vmatprep.subr.mxu0 0.0
        %1481 = vmatpush1.msra.mxu0 0.0
        %1482 = vmatprep.mubr.f32.mxu0 0.0
        %1483 = vmatmul.mubr.f32.gmra.mrb[0].mxu0 %v1416
        %v1484 = vpop.f32.mrb[0].mxu0
        %v1485 = vadd.f32 0.0, %v1484
        %v1486 = vpop.f32.mrb[0].mxu0
        %1487 = vdwg.mxu0
        %s1488 = scalar_lea.vmem [#allocation2], 768
        %v1489 = vld [vmem:[%s1488] sm:$0xff]
        %v1490 = vld [vmem:[%s1488 + $0x8] sm:$0xff]
        %v1491 = vld [vmem:[%s1488 + $0x10] sm:$0xff]
        %v1492 = vld [vmem:[%s1488 + $0x18] sm:$0xff]
        %v1493 = vld [vmem:[%s1488 + $0x20] sm:$0xff]
        %v1494 = vld [vmem:[%s1488 + $0x28] sm:$0xff]
        %v1495 = vld [vmem:[%s1488 + $0x30] sm:$0xff]
        %v1496 = vld [vmem:[%s1488 + $0x38] sm:$0xff]
        %v1497 = vld [vmem:[%s1488 + $0x40] sm:$0xff]
        %v1498 = vld [vmem:[%s1488 + $0x48] sm:$0xff]
        %v1499 = vld [vmem:[%s1488 + $0x50] sm:$0xff]
        %v1500 = vld [vmem:[%s1488 + $0x58] sm:$0xff]
        %v1501 = vld [vmem:[%s1488 + $0x60] sm:$0xff]
        %v1502 = vld [vmem:[%s1488 + $0x68] sm:$0xff]
        %v1503 = vld [vmem:[%s1488 + $0x70] sm:$0xff]
        %v1504 = vld [vmem:[%s1488 + $0x78] sm:$0xff]
        %v1506 = vsel %vm592, %v1485, 0
        %1508 = vmatprep.subr.mxu0 %v1490
        %1509 = vmatpush1.msra.mxu0 %v1489
        %1510 = vmatprep.subr.mxu0 %v1492
        %1511 = vmatpush1.msra.mxu0 %v1491
        %1512 = vmatprep.subr.mxu0 %v1494
        %1513 = vmatpush1.msra.mxu0 %v1493
        %1514 = vmatprep.subr.mxu0 %v1496
        %1515 = vmatpush1.msra.mxu0 %v1495
        %1516 = vmatprep.subr.mxu0 %v1498
        %1517 = vmatpush1.msra.mxu0 %v1497
        %1518 = vmatprep.subr.mxu0 %v1500
        %1519 = vmatpush1.msra.mxu0 %v1499
        %1520 = vmatprep.subr.mxu0 %v1502
        %1521 = vmatpush1.msra.mxu0 %v1501
        %1522 = vmatprep.subr.mxu0 %v1504
        %1523 = vmatpush1.msra.mxu0 %v1503
        %1524 = vmatprep.subr.mxu0 0.0
        %1525 = vmatpush1.msra.mxu0 0.0
        %1526 = vmatprep.subr.mxu0 0.0
        %1527 = vmatpush1.msra.mxu0 0.0
        %1528 = vmatprep.subr.mxu0 0.0
        %1529 = vmatpush1.msra.mxu0 0.0
        %1530 = vmatprep.subr.mxu0 0.0
        %1531 = vmatpush1.msra.mxu0 0.0
        %1532 = vmatprep.subr.mxu0 0.0
        %1533 = vmatpush1.msra.mxu0 0.0
        %1534 = vmatprep.subr.mxu0 0.0
        %1535 = vmatpush1.msra.mxu0 0.0
        %1536 = vmatprep.subr.mxu0 0.0
        %1537 = vmatpush1.msra.mxu0 0.0
        %1538 = vmatprep.subr.mxu0 0.0
        %1539 = vmatpush1.msra.mxu0 0.0
        %1540 = vmatprep.subr.mxu0 0.0
        %1541 = vmatpush1.msra.mxu0 0.0
        %1542 = vmatprep.subr.mxu0 0.0
        %1543 = vmatpush1.msra.mxu0 0.0
        %1544 = vmatprep.subr.mxu0 0.0
        %1545 = vmatpush1.msra.mxu0 0.0
        %1546 = vmatprep.subr.mxu0 0.0
        %1547 = vmatpush1.msra.mxu0 0.0
        %1548 = vmatprep.subr.mxu0 0.0
        %1549 = vmatpush1.msra.mxu0 0.0
        %1550 = vmatprep.subr.mxu0 0.0
        %1551 = vmatpush1.msra.mxu0 0.0
        %1552 = vmatprep.subr.mxu0 0.0
        %1553 = vmatpush1.msra.mxu0 0.0
        %1554 = vmatprep.subr.mxu0 0.0
        %1555 = vmatpush1.msra.mxu0 0.0
        %1556 = vmatprep.subr.mxu0 0.0
        %1557 = vmatpush1.msra.mxu0 0.0
        %1558 = vmatprep.subr.mxu0 0.0
        %1559 = vmatpush1.msra.mxu0 0.0
        %1560 = vmatprep.subr.mxu0 0.0
        %1561 = vmatpush1.msra.mxu0 0.0
        %1562 = vmatprep.subr.mxu0 0.0
        %1563 = vmatpush1.msra.mxu0 0.0
        %1564 = vmatprep.subr.mxu0 0.0
        %1565 = vmatpush1.msra.mxu0 0.0
        %1566 = vmatprep.subr.mxu0 0.0
        %1567 = vmatpush1.msra.mxu0 0.0
        %1568 = vmatprep.subr.mxu0 0.0
        %1569 = vmatpush1.msra.mxu0 0.0
        %1570 = vmatprep.subr.mxu0 0.0
        %1571 = vmatpush1.msra.mxu0 0.0
        %1572 = vmatprep.mubr.f32.mxu0 0.0
        %1573 = vmatmul.mubr.f32.gmra.mrb[0].mxu0 %v1506
        %v1574 = vpop.f32.mrb[0].mxu0
        %v1575 = vadd.f32 0.0, %v1574
        %v1576 = vpop.f32.mrb[0].mxu0
        %v1577 = vadd.f32 0.0, %v1576
        %1578 = vdwg.mxu0
        %v1579 = vadd.f32 %v1411, %v1575
        %v1580 = vadd.f32 %v1412, %v1577
        %s1581 = scalar_lea.vmem %s3, 28
        %v1582 = vld [vmem:[%s1581] sm:$0xf]
        %v1584 = vsel %vm406, %v1582, 0
        %1586 = vmatprep.subr.mxu0 0.0
        %1587 = vmatpush1.msra.mxu0 %v412
        %1588 = vmatprep.subr.mxu0 0.0
        %1589 = vmatpush1.msra.mxu0 0.0
        %1590 = vmatprep.subr.mxu0 0.0
        %1591 = vmatpush1.msra.mxu0 0.0
        %1592 = vmatprep.subr.mxu0 0.0
        %1593 = vmatpush1.msra.mxu0 0.0
        %1594 = vmatprep.subr.mxu0 0.0
        %1595 = vmatpush1.msra.mxu0 0.0
        %1596 = vmatprep.subr.mxu0 0.0
        %1597 = vmatpush1.msra.mxu0 0.0
        %1598 = vmatprep.subr.mxu0 0.0
        %1599 = vmatpush1.msra.mxu0 0.0
        %1600 = vmatprep.subr.mxu0 0.0
        %1601 = vmatpush1.msra.mxu0 0.0
        %1602 = vmatprep.subr.mxu0 0.0
        %1603 = vmatpush1.msra.mxu0 0.0
        %1604 = vmatprep.subr.mxu0 0.0
        %1605 = vmatpush1.msra.mxu0 0.0
        %1606 = vmatprep.subr.mxu0 0.0
        %1607 = vmatpush1.msra.mxu0 0.0
        %1608 = vmatprep.subr.mxu0 0.0
        %1609 = vmatpush1.msra.mxu0 0.0
        %1610 = vmatprep.subr.mxu0 0.0
        %1611 = vmatpush1.msra.mxu0 0.0
        %1612 = vmatprep.subr.mxu0 0.0
        %1613 = vmatpush1.msra.mxu0 0.0
        %1614 = vmatprep.subr.mxu0 0.0
        %1615 = vmatpush1.msra.mxu0 0.0
        %1616 = vmatprep.subr.mxu0 0.0
        %1617 = vmatpush1.msra.mxu0 0.0
        %1618 = vmatprep.subr.mxu0 0.0
        %1619 = vmatpush1.msra.mxu0 0.0
        %1620 = vmatprep.subr.mxu0 0.0
        %1621 = vmatpush1.msra.mxu0 0.0
        %1622 = vmatprep.subr.mxu0 0.0
        %1623 = vmatpush1.msra.mxu0 0.0
        %1624 = vmatprep.subr.mxu0 0.0
        %1625 = vmatpush1.msra.mxu0 0.0
        %1626 = vmatprep.subr.mxu0 0.0
        %1627 = vmatpush1.msra.mxu0 0.0
        %1628 = vmatprep.subr.mxu0 0.0
        %1629 = vmatpush1.msra.mxu0 0.0
        %1630 = vmatprep.subr.mxu0 0.0
        %1631 = vmatpush1.msra.mxu0 0.0
        %1632 = vmatprep.subr.mxu0 0.0
        %1633 = vmatpush1.msra.mxu0 0.0
        %1634 = vmatprep.subr.mxu0 0.0
        %1635 = vmatpush1.msra.mxu0 0.0
        %1636 = vmatprep.subr.mxu0 0.0
        %1637 = vmatpush1.msra.mxu0 0.0
        %1638 = vmatprep.subr.mxu0 0.0
        %1639 = vmatpush1.msra.mxu0 0.0
        %1640 = vmatprep.subr.mxu0 0.0
        %1641 = vmatpush1.msra.mxu0 0.0
        %1642 = vmatprep.subr.mxu0 0.0
        %1643 = vmatpush1.msra.mxu0 0.0
        %1644 = vmatprep.subr.mxu0 0.0
        %1645 = vmatpush1.msra.mxu0 0.0
        %1646 = vmatprep.subr.mxu0 0.0
        %1647 = vmatpush1.msra.mxu0 0.0
        %1648 = vmatprep.subr.mxu0 0.0
        %1649 = vmatpush1.msra.mxu0 0.0
        %1650 = vmatprep.mubr.f32.mxu0 0.0
        %1651 = vmatmul.mubr.f32.gmra.mrb[0].mxu0 %v1584
        %v1652 = vpop.f32.mrb[0].mxu0
        %v1653 = vadd.f32 0.0, %v1652
        %v1654 = vpop.f32.mrb[0].mxu0
        %1655 = vdwg.mxu0
        %s1656 = scalar_lea.vmem [#allocation2], 896
        %v1657 = vld [vmem:[%s1656] sm:$0xff]
        %v1658 = vld [vmem:[%s1656 + $0x8] sm:$0xff]
        %v1659 = vld [vmem:[%s1656 + $0x10] sm:$0xff]
        %v1660 = vld [vmem:[%s1656 + $0x18] sm:$0xff]
        %v1661 = vld [vmem:[%s1656 + $0x20] sm:$0xff]
        %v1662 = vld [vmem:[%s1656 + $0x28] sm:$0xff]
        %v1663 = vld [vmem:[%s1656 + $0x30] sm:$0xff]
        %v1664 = vld [vmem:[%s1656 + $0x38] sm:$0xff]
        %v1665 = vld [vmem:[%s1656 + $0x40] sm:$0xff]
        %v1666 = vld [vmem:[%s1656 + $0x48] sm:$0xff]
        %v1667 = vld [vmem:[%s1656 + $0x50] sm:$0xff]
        %v1668 = vld [vmem:[%s1656 + $0x58] sm:$0xff]
        %v1669 = vld [vmem:[%s1656 + $0x60] sm:$0xff]
        %v1670 = vld [vmem:[%s1656 + $0x68] sm:$0xff]
        %v1671 = vld [vmem:[%s1656 + $0x70] sm:$0xff]
        %v1672 = vld [vmem:[%s1656 + $0x78] sm:$0xff]
        %v1674 = vsel %vm592, %v1653, 0
        %1676 = vmatprep.subr.mxu0 %v1658
        %1677 = vmatpush1.msra.mxu0 %v1657
        %1678 = vmatprep.subr.mxu0 %v1660
        %1679 = vmatpush1.msra.mxu0 %v1659
        %1680 = vmatprep.subr.mxu0 %v1662
        %1681 = vmatpush1.msra.mxu0 %v1661
        %1682 = vmatprep.subr.mxu0 %v1664
        %1683 = vmatpush1.msra.mxu0 %v1663
        %1684 = vmatprep.subr.mxu0 %v1666
        %1685 = vmatpush1.msra.mxu0 %v1665
        %1686 = vmatprep.subr.mxu0 %v1668
        %1687 = vmatpush1.msra.mxu0 %v1667
        %1688 = vmatprep.subr.mxu0 %v1670
        %1689 = vmatpush1.msra.mxu0 %v1669
        %1690 = vmatprep.subr.mxu0 %v1672
        %1691 = vmatpush1.msra.mxu0 %v1671
        %1692 = vmatprep.subr.mxu0 0.0
        %1693 = vmatpush1.msra.mxu0 0.0
        %1694 = vmatprep.subr.mxu0 0.0
        %1695 = vmatpush1.msra.mxu0 0.0
        %1696 = vmatprep.subr.mxu0 0.0
        %1697 = vmatpush1.msra.mxu0 0.0
        %1698 = vmatprep.subr.mxu0 0.0
        %1699 = vmatpush1.msra.mxu0 0.0
        %1700 = vmatprep.subr.mxu0 0.0
        %1701 = vmatpush1.msra.mxu0 0.0
        %1702 = vmatprep.subr.mxu0 0.0
        %1703 = vmatpush1.msra.mxu0 0.0
        %1704 = vmatprep.subr.mxu0 0.0
        %1705 = vmatpush1.msra.mxu0 0.0
        %1706 = vmatprep.subr.mxu0 0.0
        %1707 = vmatpush1.msra.mxu0 0.0
        %1708 = vmatprep.subr.mxu0 0.0
        %1709 = vmatpush1.msra.mxu0 0.0
        %1710 = vmatprep.subr.mxu0 0.0
        %1711 = vmatpush1.msra.mxu0 0.0
        %1712 = vmatprep.subr.mxu0 0.0
        %1713 = vmatpush1.msra.mxu0 0.0
        %1714 = vmatprep.subr.mxu0 0.0
        %1715 = vmatpush1.msra.mxu0 0.0
        %1716 = vmatprep.subr.mxu0 0.0
        %1717 = vmatpush1.msra.mxu0 0.0
        %1718 = vmatprep.subr.mxu0 0.0
        %1719 = vmatpush1.msra.mxu0 0.0
        %1720 = vmatprep.subr.mxu0 0.0
        %1721 = vmatpush1.msra.mxu0 0.0
        %1722 = vmatprep.subr.mxu0 0.0
        %1723 = vmatpush1.msra.mxu0 0.0
        %1724 = vmatprep.subr.mxu0 0.0
        %1725 = vmatpush1.msra.mxu0 0.0
        %1726 = vmatprep.subr.mxu0 0.0
        %1727 = vmatpush1.msra.mxu0 0.0
        %1728 = vmatprep.subr.mxu0 0.0
        %1729 = vmatpush1.msra.mxu0 0.0
        %1730 = vmatprep.subr.mxu0 0.0
        %1731 = vmatpush1.msra.mxu0 0.0
        %1732 = vmatprep.subr.mxu0 0.0
        %1733 = vmatpush1.msra.mxu0 0.0
        %1734 = vmatprep.subr.mxu0 0.0
        %1735 = vmatpush1.msra.mxu0 0.0
        %1736 = vmatprep.subr.mxu0 0.0
        %1737 = vmatpush1.msra.mxu0 0.0
        %1738 = vmatprep.subr.mxu0 0.0
        %1739 = vmatpush1.msra.mxu0 0.0
        %1740 = vmatprep.mubr.f32.mxu0 0.0
        %1741 = vmatmul.mubr.f32.gmra.mrb[0].mxu0 %v1674
        %v1742 = vpop.f32.mrb[0].mxu0
        %v1743 = vadd.f32 0.0, %v1742
        %v1744 = vpop.f32.mrb[0].mxu0
        %v1745 = vadd.f32 0.0, %v1744
        %1746 = vdwg.mxu0
        %v1747 = vadd.f32 %v1579, %v1743
        %v1748 = vadd.f32 %v1580, %v1745
        %s1749 = scalar_lea.vmem %s3, 32
        %v1750 = vld [vmem:[%s1749] sm:$0xf]
        %v1752 = vsel %vm406, %v1750, 0
        %1754 = vmatprep.subr.mxu0 0.0
        %1755 = vmatpush1.msra.mxu0 %v412
        %1756 = vmatprep.subr.mxu0 0.0
        %1757 = vmatpush1.msra.mxu0 0.0
        %1758 = vmatprep.subr.mxu0 0.0
        %1759 = vmatpush1.msra.mxu0 0.0
        %1760 = vmatprep.subr.mxu0 0.0
        %1761 = vmatpush1.msra.mxu0 0.0
        %1762 = vmatprep.subr.mxu0 0.0
        %1763 = vmatpush1.msra.mxu0 0.0
        %1764 = vmatprep.subr.mxu0 0.0
        %1765 = vmatpush1.msra.mxu0 0.0
        %1766 = vmatprep.subr.mxu0 0.0
        %1767 = vmatpush1.msra.mxu0 0.0
        %1768 = vmatprep.subr.mxu0 0.0
        %1769 = vmatpush1.msra.mxu0 0.0
        %1770 = vmatprep.subr.mxu0 0.0
        %1771 = vmatpush1.msra.mxu0 0.0
        %1772 = vmatprep.subr.mxu0 0.0
        %1773 = vmatpush1.msra.mxu0 0.0
        %1774 = vmatprep.subr.mxu0 0.0
        %1775 = vmatpush1.msra.mxu0 0.0
        %1776 = vmatprep.subr.mxu0 0.0
        %1777 = vmatpush1.msra.mxu0 0.0
        %1778 = vmatprep.subr.mxu0 0.0
        %1779 = vmatpush1.msra.mxu0 0.0
        %1780 = vmatprep.subr.mxu0 0.0
        %1781 = vmatpush1.msra.mxu0 0.0
        %1782 = vmatprep.subr.mxu0 0.0
        %1783 = vmatpush1.msra.mxu0 0.0
        %1784 = vmatprep.subr.mxu0 0.0
        %1785 = vmatpush1.msra.mxu0 0.0
        %1786 = vmatprep.subr.mxu0 0.0
        %1787 = vmatpush1.msra.mxu0 0.0
        %1788 = vmatprep.subr.mxu0 0.0
        %1789 = vmatpush1.msra.mxu0 0.0
        %1790 = vmatprep.subr.mxu0 0.0
        %1791 = vmatpush1.msra.mxu0 0.0
        %1792 = vmatprep.subr.mxu0 0.0
        %1793 = vmatpush1.msra.mxu0 0.0
        %1794 = vmatprep.subr.mxu0 0.0
        %1795 = vmatpush1.msra.mxu0 0.0
        %1796 = vmatprep.subr.mxu0 0.0
        %1797 = vmatpush1.msra.mxu0 0.0
        %1798 = vmatprep.subr.mxu0 0.0
        %1799 = vmatpush1.msra.mxu0 0.0
        %1800 = vmatprep.subr.mxu0 0.0
        %1801 = vmatpush1.msra.mxu0 0.0
        %1802 = vmatprep.subr.mxu0 0.0
        %1803 = vmatpush1.msra.mxu0 0.0
        %1804 = vmatprep.subr.mxu0 0.0
        %1805 = vmatpush1.msra.mxu0 0.0
        %1806 = vmatprep.subr.mxu0 0.0
        %1807 = vmatpush1.msra.mxu0 0.0
        %1808 = vmatprep.subr.mxu0 0.0
        %1809 = vmatpush1.msra.mxu0 0.0
        %1810 = vmatprep.subr.mxu0 0.0
        %1811 = vmatpush1.msra.mxu0 0.0
        %1812 = vmatprep.subr.mxu0 0.0
        %1813 = vmatpush1.msra.mxu0 0.0
        %1814 = vmatprep.subr.mxu0 0.0
        %1815 = vmatpush1.msra.mxu0 0.0
        %1816 = vmatprep.subr.mxu0 0.0
        %1817 = vmatpush1.msra.mxu0 0.0
        %1818 = vmatprep.mubr.f32.mxu0 0.0
        %1819 = vmatmul.mubr.f32.gmra.mrb[0].mxu0 %v1752
        %v1820 = vpop.f32.mrb[0].mxu0
        %v1821 = vadd.f32 0.0, %v1820
        %v1822 = vpop.f32.mrb[0].mxu0
        %1823 = vdwg.mxu0
        %s1824 = scalar_lea.vmem [#allocation2], 1024
        %v1825 = vld [vmem:[%s1824] sm:$0xff]
        %v1826 = vld [vmem:[%s1824 + $0x8] sm:$0xff]
        %v1827 = vld [vmem:[%s1824 + $0x10] sm:$0xff]
        %v1828 = vld [vmem:[%s1824 + $0x18] sm:$0xff]
        %v1829 = vld [vmem:[%s1824 + $0x20] sm:$0xff]
        %v1830 = vld [vmem:[%s1824 + $0x28] sm:$0xff]
        %v1831 = vld [vmem:[%s1824 + $0x30] sm:$0xff]
        %v1832 = vld [vmem:[%s1824 + $0x38] sm:$0xff]
        %v1833 = vld [vmem:[%s1824 + $0x40] sm:$0xff]
        %v1834 = vld [vmem:[%s1824 + $0x48] sm:$0xff]
        %v1835 = vld [vmem:[%s1824 + $0x50] sm:$0xff]
        %v1836 = vld [vmem:[%s1824 + $0x58] sm:$0xff]
        %v1837 = vld [vmem:[%s1824 + $0x60] sm:$0xff]
        %v1838 = vld [vmem:[%s1824 + $0x68] sm:$0xff]
        %v1839 = vld [vmem:[%s1824 + $0x70] sm:$0xff]
        %v1840 = vld [vmem:[%s1824 + $0x78] sm:$0xff]
        %v1842 = vsel %vm592, %v1821, 0
        %1844 = vmatprep.subr.mxu0 %v1826
        %1845 = vmatpush1.msra.mxu0 %v1825
        %1846 = vmatprep.subr.mxu0 %v1828
        %1847 = vmatpush1.msra.mxu0 %v1827
        %1848 = vmatprep.subr.mxu0 %v1830
        %1849 = vmatpush1.msra.mxu0 %v1829
        %1850 = vmatprep.subr.mxu0 %v1832
        %1851 = vmatpush1.msra.mxu0 %v1831
        %1852 = vmatprep.subr.mxu0 %v1834
        %1853 = vmatpush1.msra.mxu0 %v1833
        %1854 = vmatprep.subr.mxu0 %v1836
        %1855 = vmatpush1.msra.mxu0 %v1835
        %1856 = vmatprep.subr.mxu0 %v1838
        %1857 = vmatpush1.msra.mxu0 %v1837
        %1858 = vmatprep.subr.mxu0 %v1840
        %1859 = vmatpush1.msra.mxu0 %v1839
        %1860 = vmatprep.subr.mxu0 0.0
        %1861 = vmatpush1.msra.mxu0 0.0
        %1862 = vmatprep.subr.mxu0 0.0
        %1863 = vmatpush1.msra.mxu0 0.0
        %1864 = vmatprep.subr.mxu0 0.0
        %1865 = vmatpush1.msra.mxu0 0.0
        %1866 = vmatprep.subr.mxu0 0.0
        %1867 = vmatpush1.msra.mxu0 0.0
        %1868 = vmatprep.subr.mxu0 0.0
        %1869 = vmatpush1.msra.mxu0 0.0
        %1870 = vmatprep.subr.mxu0 0.0
        %1871 = vmatpush1.msra.mxu0 0.0
        %1872 = vmatprep.subr.mxu0 0.0
        %1873 = vmatpush1.msra.mxu0 0.0
        %1874 = vmatprep.subr.mxu0 0.0
        %1875 = vmatpush1.msra.mxu0 0.0
        %1876 = vmatprep.subr.mxu0 0.0
        %1877 = vmatpush1.msra.mxu0 0.0
        %1878 = vmatprep.subr.mxu0 0.0
        %1879 = vmatpush1.msra.mxu0 0.0
        %1880 = vmatprep.subr.mxu0 0.0
        %1881 = vmatpush1.msra.mxu0 0.0
        %1882 = vmatprep.subr.mxu0 0.0
        %1883 = vmatpush1.msra.mxu0 0.0
        %1884 = vmatprep.subr.mxu0 0.0
        %1885 = vmatpush1.msra.mxu0 0.0
        %1886 = vmatprep.subr.mxu0 0.0
        %1887 = vmatpush1.msra.mxu0 0.0
        %1888 = vmatprep.subr.mxu0 0.0
        %1889 = vmatpush1.msra.mxu0 0.0
        %1890 = vmatprep.subr.mxu0 0.0
        %1891 = vmatpush1.msra.mxu0 0.0
        %1892 = vmatprep.subr.mxu0 0.0
        %1893 = vmatpush1.msra.mxu0 0.0
        %1894 = vmatprep.subr.mxu0 0.0
        %1895 = vmatpush1.msra.mxu0 0.0
        %1896 = vmatprep.subr.mxu0 0.0
        %1897 = vmatpush1.msra.mxu0 0.0
        %1898 = vmatprep.subr.mxu0 0.0
        %1899 = vmatpush1.msra.mxu0 0.0
        %1900 = vmatprep.subr.mxu0 0.0
        %1901 = vmatpush1.msra.mxu0 0.0
        %1902 = vmatprep.subr.mxu0 0.0
        %1903 = vmatpush1.msra.mxu0 0.0
        %1904 = vmatprep.subr.mxu0 0.0
        %1905 = vmatpush1.msra.mxu0 0.0
        %1906 = vmatprep.subr.mxu0 0.0
        %1907 = vmatpush1.msra.mxu0 0.0
        %1908 = vmatprep.mubr.f32.mxu0 0.0
        %1909 = vmatmul.mubr.f32.gmra.mrb[0].mxu0 %v1842
        %v1910 = vpop.f32.mrb[0].mxu0
        %v1911 = vadd.f32 0.0, %v1910
        %v1912 = vpop.f32.mrb[0].mxu0
        %v1913 = vadd.f32 0.0, %v1912
        %1914 = vdwg.mxu0
        %v1915 = vadd.f32 %v1747, %v1911
        %v1916 = vadd.f32 %v1748, %v1913
        %v1917 = vld [vmem:[%s5] sm:$0xf]
        %1919 = vset.pattern.permute.xlu0 0
        %1920 = vperm.xlu0 %1919, %v1917
        %v1921 = vpop.permute.xlu0 %1920
        %v1923 = vadd.f32 %v1915, %v1921
        %v1924 = vadd.f32 %v1916, %v1921
        %v1925 = vmax.f32 %v1923, 0.0
        %v1926 = vmax.f32 %v1924, 0.0
        %v1927 = vld [vmem:[%s6] sm:$0xff]
        %v1928 = vld [vmem:[%s7] sm:$0xff]
        %1930 = vset.pattern.permute.xlu0 0
        %1931 = vperm.xlu0 %1930, %v1928
        %v1932 = vpop.permute.xlu0 %1931
        %v1935 = vsel %vm406, %v1927, 0
        %v1938 = vsel %vm410, %v1925, 0
        %v1941 = vsel %vm410, %v1926, 0
        %1943 = vmatprep.subr.mxu0 %v1941
        %1944 = vmatpush1.msra.mxu0 %v1938
        %1945 = vmatprep.subr.mxu0 0.0
        %1946 = vmatpush1.msra.mxu0 0.0
        %1947 = vmatprep.subr.mxu0 0.0
        %1948 = vmatpush1.msra.mxu0 0.0
        %1949 = vmatprep.subr.mxu0 0.0
        %1950 = vmatpush1.msra.mxu0 0.0
        %1951 = vmatprep.subr.mxu0 0.0
        %1952 = vmatpush1.msra.mxu0 0.0
        %1953 = vmatprep.subr.mxu0 0.0
        %1954 = vmatpush1.msra.mxu0 0.0
        %1955 = vmatprep.subr.mxu0 0.0
        %1956 = vmatpush1.msra.mxu0 0.0
        %1957 = vmatprep.subr.mxu0 0.0
        %1958 = vmatpush1.msra.mxu0 0.0
        %1959 = vmatprep.subr.mxu0 0.0
        %1960 = vmatpush1.msra.mxu0 0.0
        %1961 = vmatprep.subr.mxu0 0.0
        %1962 = vmatpush1.msra.mxu0 0.0
        %1963 = vmatprep.subr.mxu0 0.0
        %1964 = vmatpush1.msra.mxu0 0.0
        %1965 = vmatprep.subr.mxu0 0.0
        %1966 = vmatpush1.msra.mxu0 0.0
        %1967 = vmatprep.subr.mxu0 0.0
        %1968 = vmatpush1.msra.mxu0 0.0
        %1969 = vmatprep.subr.mxu0 0.0
        %1970 = vmatpush1.msra.mxu0 0.0
        %1971 = vmatprep.subr.mxu0 0.0
        %1972 = vmatpush1.msra.mxu0 0.0
        %1973 = vmatprep.subr.mxu0 0.0
        %1974 = vmatpush1.msra.mxu0 0.0
        %1975 = vmatprep.subr.mxu0 0.0
        %1976 = vmatpush1.msra.mxu0 0.0
        %1977 = vmatprep.subr.mxu0 0.0
        %1978 = vmatpush1.msra.mxu0 0.0
        %1979 = vmatprep.subr.mxu0 0.0
        %1980 = vmatpush1.msra.mxu0 0.0
        %1981 = vmatprep.subr.mxu0 0.0
        %1982 = vmatpush1.msra.mxu0 0.0
        %1983 = vmatprep.subr.mxu0 0.0
        %1984 = vmatpush1.msra.mxu0 0.0
        %1985 = vmatprep.subr.mxu0 0.0
        %1986 = vmatpush1.msra.mxu0 0.0
        %1987 = vmatprep.subr.mxu0 0.0
        %1988 = vmatpush1.msra.mxu0 0.0
        %1989 = vmatprep.subr.mxu0 0.0
        %1990 = vmatpush1.msra.mxu0 0.0
        %1991 = vmatprep.subr.mxu0 0.0
        %1992 = vmatpush1.msra.mxu0 0.0
        %1993 = vmatprep.subr.mxu0 0.0
        %1994 = vmatpush1.msra.mxu0 0.0
        %1995 = vmatprep.subr.mxu0 0.0
        %1996 = vmatpush1.msra.mxu0 0.0
        %1997 = vmatprep.subr.mxu0 0.0
        %1998 = vmatpush1.msra.mxu0 0.0
        %1999 = vmatprep.subr.mxu0 0.0
        %2000 = vmatpush1.msra.mxu0 0.0
        %2001 = vmatprep.subr.mxu0 0.0
        %2002 = vmatpush1.msra.mxu0 0.0
        %2003 = vmatprep.subr.mxu0 0.0
        %2004 = vmatpush1.msra.mxu0 0.0
        %2005 = vmatprep.subr.mxu0 0.0
        %2006 = vmatpush1.msra.mxu0 0.0
        %2007 = vmatprep.mubr.f32.mxu0 0.0
        %2008 = vmatmul.mubr.f32.gmra.mrb[0].mxu0 %v1935
        %v2009 = vpop.f32.mrb[0].mxu0
        %v2010 = vadd.f32 %v1932, %v2009
        %v2011 = vpop.f32.mrb[0].mxu0
        %v2012 = vadd.f32 %v1932, %v2011
        %2013 = vdwg.mxu0
        %v2014 = vmax.f32 %v2010, 0.0
        %v2015 = vmax.f32 %v2012, 0.0
        %2016 = vst [vmem:[%s320] sm:$0xff] %v2014
        %2017 = vst [vmem:[%s320 + $0x8] sm:$0xff] %v2015
        %p2018 = scmp.lt.s32.totalorder %s20, 1
        %s2019 = scalar_select %p2018, %s20, 1
        %s2020 = smul.addr %s2019, 2
        %s2021 = smul.addr %s2020, 8
        %s2022 = scalar_lea.vmem %s8, %s2021
        // Predicated region
        $region57: #{decoder_forward.1} parent=51 // pred_check
          %p2023 = pneg %p211
        $region58: #{decoder_forward.1} parent=51 // pred_check_branch
          %2025 = sbr.rel (%p2023) target = $region60
        $region59: #{decoder_forward.1} parent=51 // pred_region
          _
        $region60: #{decoder_forward.1} parent=51 // pred_fallthru
          _
      $region52: #{decoder_forward.1} parent=5 // pred_fallthru
        _
      %p2026 = scmp.le.s32.totalorder 2, %s15
      // Predicated region
      $region61: #{decoder_forward.1} parent=5 // pred_check
        %p2027 = pneg %p2026
      $region62: #{decoder_forward.1} parent=5 // pred_check_branch
        %2029 = sbr.rel (%p2027) target = $region64
      $region63: #{decoder_forward.1} parent=5 // pred_region
        %s2030 = ssub.s32 %s15, 2
        // Predicated region
        $region65: #{decoder_forward.1} parent=63 // pred_check
          %p2031 = pneg %p217
        $region66: #{decoder_forward.1} parent=63 // pred_check_branch
          %2033 = sbr.rel (%p2031) target = $region68
        $region67: #{decoder_forward.1} parent=63 // pred_region
          %p2034 = scmp.lt.s32.totalorder %s21, 1
          %s2035 = scalar_select %p2034, %s21, 1
          %s2036 = smul.addr %s2035, 2
          %s2037 = smul.addr %s2036, 8
          %s2038 = scalar_lea.vmem %s8, %s2037
        $region68: #{decoder_forward.1} parent=63 // pred_fallthru
          _
      $region64: #{decoder_forward.1} parent=5 // pred_fallthru
        _
    $region6: #{decoder_forward.1} parent=1 // loop_footer
      %s19 = sadd.s32 1, %s15
    $region7: #{decoder_forward.1} parent=1 // loop_footer_branch
      %14 = sbr.rel target = $region3
    $region8: #{decoder_forward.1} parent=1 // loop_exit
      _
    %2039 = vsyncpa [#allocation3], 1
    %s2040 = scalar_lea.sflag [#allocation3], 1
    %2041 = vsyncpa %s2040, 1

</llo_original>
